<compile_context>
chip_gen: v5e
topology: v5e:2x2
jax: 0.10.0
libtpu: 0.0.40
codegen_flags: <defaults>
</compile_context>

<pallas_src>
import functools

import jax
import jax.numpy as jnp
from jax.experimental import pallas as pl
from jax.experimental.pallas import tpu as pltpu

BN_EPS = 1e-5
LANE = 128
SUBLANE = 8


def _ceil_to(x, m):
    return ((x + m - 1) // m) * m


def _pick_row_tile(np_):
    for cand in (512, 256, 128):
        if np_ % cand == 0:
            return cand
    return np_


def _resident_spec(shape):
    zeros = (0,) * len(shape)
    return pl.BlockSpec(shape, lambda l, r, _z=zeros: _z)


# ----------------------------------------------------------------------------
# Fused kernel.  Grid = (num_layers, node_row_tiles), both "arbitrary".
#   layer 0   : agg = (A_tile @ x) / deg ; h_new = relu(agg@W0l + x_tile@W0r + b0)
#   layer >= 1: same but source features come from the resident ping-pong h buffer.
#   last layer: per-graph partial sums accumulated; final step runs the classifier.
# ----------------------------------------------------------------------------
def fused_sage_kernel(a_ref, invdeg_ref, x_ref, w0l_ref, w0r_ref,
                      wl_ref, wr_ref, b_ref, p_ref, invcnt_ref,
                      wc_ref, bc_ref, out_ref, h_ref, pool_ref):
    l = pl.program_id(0)
    r = pl.program_id(1)
    num_layers = pl.num_programs(0)
    num_tiles = pl.num_programs(1)

    tr = a_ref.shape[0]                                   # node row-tile size
    row0 = pl.multiple_of(r * tr, tr)

    src_slot = jax.lax.rem(l, 2)                          # h ping-pong slots
    dst_slot = jax.lax.rem(l + 1, 2)

    a_tile = a_ref[...].astype(jnp.bfloat16)              # int8 counts -> bf16 (exact)
    inv_deg = invdeg_ref[pl.ds(row0, tr), :]              # (TR, 1) f32, deferred 1/deg
    bias = b_ref[l]                                       # (1, HPH) f32 (BN folded)

    # ---- layer 0: source features = x (width HPIN), weights w0l / w0r --------------
    @pl.when(l == 0)
    def _():
        agg = jnp.dot(a_tile, x_ref[...],
                      preferred_element_type=jnp.float32) * inv_deg
        z = (jnp.dot(agg.astype(jnp.bfloat16), w0l_ref[...],
                     preferred_element_type=jnp.float32)
             + jnp.dot(x_ref[pl.ds(row0, tr), :], w0r_ref[...],
                       preferred_element_type=jnp.float32)
             + bias)
        h_ref[dst_slot, pl.ds(row0, tr), :] = jnp.maximum(z, 0.0).astype(jnp.bfloat16)

    # ---- layers >= 1: source features = resident h buffer (width HPH) ---------------
    @pl.when(l > 0)
    def _():
        wi = jnp.maximum(l - 1, 0)
        h_src = h_ref[src_slot]                            # (NP, HPH) bf16
        agg = jnp.dot(a_tile, h_src,
                      preferred_element_type=jnp.float32) * inv_deg
        z = (jnp.dot(agg.astype(jnp.bfloat16), wl_ref[wi],
                     preferred_element_type=jnp.float32)
             + jnp.dot(h_ref[src_slot, pl.ds(row0, tr), :], wr_ref[wi],
                       preferred_element_type=jnp.float32)
             + bias)
        h_ref[dst_slot, pl.ds(row0, tr), :] = jnp.maximum(z, 0.0).astype(jnp.bfloat16)

    # ---- global mean pool fused into the last layer's row-tile loop -----------------
    @pl.when(l == num_layers - 1)
    def _():
        @pl.when(r == 0)
        def _():
            pool_ref[...] = jnp.zeros_like(pool_ref)

        h_new = h_ref[dst_slot, pl.ds(row0, tr), :]        # (TR, HPH) bf16
        pool_ref[...] += jnp.dot(p_ref[...], h_new,
                                 preferred_element_type=jnp.float32)

        @pl.when(r == num_tiles - 1)
        def _():
            pooled = (pool_ref[...] * invcnt_ref[...]).astype(jnp.bfloat16)
            out_ref[...] = (jnp.dot(pooled, wc_ref[...],
                                    preferred_element_type=jnp.float32)
                            + bc_ref[...])


# ----------------------------------------------------------------------------
# Wrapper: graph -> padded dense operands, BN folding, one pallas_call.
# ----------------------------------------------------------------------------
@functools.partial(jax.jit, static_argnames=("num_graphs",))
def sage_model_forward(x, edge_index, batch, params, num_graphs):
    n, f_in = x.shape
    layers = params["layers"]
    hidden = layers[0]["wl"].shape[1]
    num_classes = params["wc"].shape[1]
    num_layers = len(layers)

    np_ = _ceil_to(max(n, LANE), LANE)              # padded node count
    hp_in = _ceil_to(max(f_in, LANE), LANE)         # padded layer-0 input width
    hp_h = _ceil_to(max(hidden, LANE), LANE)        # padded hidden width
    cp = _ceil_to(num_classes, LANE)                # padded class width
    gp = _ceil_to(max(num_graphs, SUBLANE), SUBLANE)
    tr = _pick_row_tile(np_)                        # node row-tile size
    num_tiles = np_ // tr

    src, dst = edge_index[0], edge_index[1]

    # Raw edge-count adjacency in int8 (messages flow src -> dst); exact for <=127
    # parallel edges.  Mean normalization deferred to an in-kernel f32 multiply.
    a01 = jnp.zeros((np_, np_), jnp.int8).at[dst, src].add(jnp.int8(1))
    deg = jnp.zeros((np_,), jnp.float32).at[dst].add(1.0)
    inv_deg = (1.0 / jnp.maximum(deg, 1.0)).reshape(np_, 1)             # (NP, 1) f32

    # 0/1 graph-membership matrix; padded nodes get id -1 -> one_hot all-zeros.
    batch_p = jnp.full((np_,), -1, jnp.int32).at[:n].set(batch.astype(jnp.int32))
    p01 = jax.nn.one_hot(batch_p, gp, dtype=jnp.float32).T              # (GP, NP)
    cnt = p01.sum(axis=1, keepdims=True)
    inv_cnt = 1.0 / jnp.maximum(cnt, 1.0)                               # (GP, 1) f32
    p01 = p01.astype(jnp.bfloat16)

    # Node features, zero-padded and cast for the MXU.
    x_p = (jnp.zeros((np_, hp_in), jnp.float32)
           .at[:n, :f_in].set(x).astype(jnp.bfloat16))

    # Fold eval-mode BatchNorm into the projection weights / bias per layer.
    def fold(layer):
        scale = layer["gamma"] / jnp.sqrt(layer["running_var"] + BN_EPS)
        return (layer["wl"] * scale, layer["wr"] * scale,
                (layer["bl"] - layer["running_mean"]) * scale + layer["beta"])

    wl0, wr0, b0 = fold(layers[0])
    w0l_p = (jnp.zeros((hp_in, hp_h), jnp.float32)
             .at[:f_in, :hidden].set(wl0).astype(jnp.bfloat16))
    w0r_p = (jnp.zeros((hp_in, hp_h), jnp.float32)
             .at[:f_in, :hidden].set(wr0).astype(jnp.bfloat16))

    wl_list, wr_list, b_list = [], [], []
    b_list.append(jnp.zeros((1, hp_h), jnp.float32).at[:, :hidden].set(b0))
    for layer in layers[1:]:
        wl_f, wr_f, b_f = fold(layer)
        wl_list.append(jnp.zeros((hp_h, hp_h), jnp.float32)
                       .at[:hidden, :hidden].set(wl_f))
        wr_list.append(jnp.zeros((hp_h, hp_h), jnp.float32)
                       .at[:hidden, :hidden].set(wr_f))
        b_list.append(jnp.zeros((1, hp_h), jnp.float32).at[:, :hidden].set(b_f))
    if not wl_list:                                  # keep arrays non-empty if L == 1
        wl_list = [jnp.zeros((hp_h, hp_h), jnp.float32)]
        wr_list = [jnp.zeros((hp_h, hp_h), jnp.float32)]
    wl_all = jnp.stack(wl_list).astype(jnp.bfloat16)                    # (L-1, HPH, HPH)
    wr_all = jnp.stack(wr_list).astype(jnp.bfloat16)
    b_all = jnp.stack(b_list)                                           # (L, 1, HPH) f32

    wc_p = (jnp.zeros((hp_h, cp), jnp.float32)
            .at[:hidden, :num_classes].set(params["wc"]).astype(jnp.bfloat16))
    bc_p = jnp.zeros((1, cp), jnp.float32).at[:, :num_classes].set(params["bc"])

    args = (a01, inv_deg, x_p, w0l_p, w0r_p, wl_all, wr_all, b_all,
            p01, inv_cnt, wc_p, bc_p)

    in_specs = [
        pl.BlockSpec((tr, np_), lambda l, r: (r, 0)),       # A row tiles, streamed
        _resident_spec(inv_deg.shape),
        _resident_spec(x_p.shape),
        _resident_spec(w0l_p.shape),
        _resident_spec(w0r_p.shape),
        _resident_spec(wl_all.shape),
        _resident_spec(wr_all.shape),
        _resident_spec(b_all.shape),
        pl.BlockSpec((gp, tr), lambda l, r: (0, r)),        # pool membership row tiles
        _resident_spec(inv_cnt.shape),
        _resident_spec(wc_p.shape),
        _resident_spec(bc_p.shape),
    ]

    # Explicit VMEM budget: double-buffered streamed tiles + (double-buffered) resident
    # inputs + persistent scratch + headroom for the f32 temporaries.
    resident_bytes = sum(int(v.size) * v.dtype.itemsize for v in args[1:])
    streamed_bytes = 2 * (tr * np_ * 1 + gp * tr * 2)
    scratch_bytes = 2 * np_ * hp_h * 2 + gp * hp_h * 4
    vmem_bytes = 2 * resident_bytes + streamed_bytes + scratch_bytes + gp * cp * 4
    vmem_limit = int(min(100 * 1024 * 1024, max(vmem_bytes + (8 << 20), 16 << 20)))

    flops = (2 * np_ * np_ * hp_in + 4 * np_ * hp_in * hp_h
             + (num_layers - 1) * (2 * np_ * np_ * hp_h + 4 * np_ * hp_h * hp_h)
             + 2 * gp * np_ * hp_h + 2 * gp * hp_h * cp)
    bytes_accessed = (num_layers * int(a01.size)
                      + sum(int(v.size) * v.dtype.itemsize for v in args[1:])
                      + gp * cp * 4)

    logits_p = pl.pallas_call(
        fused_sage_kernel,
        out_shape=jax.ShapeDtypeStruct((gp, cp), jnp.float32),
        grid=(num_layers, num_tiles),
        in_specs=in_specs,
        out_specs=pl.BlockSpec((gp, cp), lambda l, r: (0, 0)),
        scratch_shapes=[
            pltpu.VMEM((2, np_, hp_h), jnp.bfloat16),   # ping-pong node features
            pltpu.VMEM((gp, hp_h), jnp.float32),        # per-graph pooled partial sums
        ],
        compiler_params=pltpu.CompilerParams(
            dimension_semantics=("arbitrary", "arbitrary"),
            vmem_limit_bytes=vmem_limit),
        cost_estimate=pl.CostEstimate(flops=flops, transcendentals=0,
                                      bytes_accessed=bytes_accessed),
    )(*args)

    return logits_p[:num_graphs, :num_classes]


# ----------------------------------------------------------------------------
# Pure-JAX f32 reference (eval-mode forward) for correctness checking.
# ----------------------------------------------------------------------------
def sage_model_reference(x, edge_index, batch, params, num_graphs):
    n = x.shape[0]
    src, dst = edge_index[0], edge_index[1]
    a = jnp.zeros((n, n), jnp.float32).at[dst, src].add(1.0)
    a = a / jnp.maximum(a.sum(axis=1, keepdims=True), 1.0)
    one_hot = jax.nn.one_hot(batch, num_graphs, dtype=jnp.float32).T
    p = one_hot / jnp.maximum(one_hot.sum(axis=1, keepdims=True), 1.0)
    h = x.astype(jnp.float32)
    for layer in params["layers"]:
        z = (a @ h) @ layer["wl"] + h @ layer["wr"] + layer["bl"]
        z = ((z - layer["running_mean"])
             * jax.lax.rsqrt(layer["running_var"] + BN_EPS)
             * layer["gamma"] + layer["beta"])
        h = jnp.maximum(z, 0.0)
    return (p @ h) @ params["wc"] + params["bc"]


def init_params(key, input_dim, hidden_dim, num_classes, num_layers):
    layers = []
    dims = [input_dim] + [hidden_dim] * num_layers
    for i in range(num_layers):
        key, k1, k2, k3 = jax.random.split(key, 4)
        din = dims[i]
        layers.append(dict(
            wl=jax.random.normal(k1, (din, hidden_dim), jnp.float32) * 0.1,  # lin_l W^T
            wr=jax.random.normal(k2, (din, hidden_dim), jnp.float32) * 0.1,  # lin_r W^T
            bl=jax.random.normal(k3, (1, hidden_dim), jnp.float32) * 0.1,    # lin_l bias
            gamma=jnp.ones((1, hidden_dim), jnp.float32),                    # BN weight
            beta=jnp.zeros((1, hidden_dim), jnp.float32),                    # BN bias
            running_mean=jnp.zeros((1, hidden_dim), jnp.float32),
            running_var=jnp.ones((1, hidden_dim), jnp.float32),
        ))
    key, k1, k2 = jax.random.split(key, 3)
    wc = jax.random.normal(k1, (hidden_dim, num_classes), jnp.float32) * 0.1
    bc = jax.random.normal(k2, (1, num_classes), jnp.float32) * 0.1
    return dict(layers=layers, wc=wc, bc=bc)


if __name__ == "__main__":
    key = jax.random.PRNGKey(0)
    N, INPUT_DIM, HIDDEN, CLASSES, LAYERS, G = 16, 8, 32, 10, 3, 2

    k_x, k_p = jax.random.split(key)
    x = jax.random.normal(k_x, (N, INPUT_DIM), jnp.float32)

    # Deterministic small graph: a ring with bidirectional edges.
    src = jnp.arange(N, dtype=jnp.int32)
    dst = (src + 1) % N
    edge_index = jnp.stack([jnp.concatenate([src, dst]),
                            jnp.concatenate([dst, src])], axis=0)        # [2, 2N]

    # First half of nodes -> graph 0, second half -> graph 1.
    batch = jnp.concatenate([jnp.zeros(N // 2, jnp.int32),
                             jnp.ones(N // 2, jnp.int32)])

    params = init_params(k_p, INPUT_DIM, HIDDEN, CLASSES, LAYERS)

    logits = sage_model_forward(x, edge_index, batch, params, num_graphs=G)
    logits = jax.block_until_ready(logits)
    assert logits.shape == (G, CLASSES)

    ref = sage_model_reference(x, edge_index, batch, params, G)
    max_err = float(jnp.max(jnp.abs(logits - ref)))
    assert max_err < 7.5e-2, f"kernel vs reference mismatch: max_err={max_err}"

    print("KERNEL_OK")
</pallas_src>

<mosaic_0001>
module attributes {stable_mosaic.version = 11 : i64} {
  func.func @fused_sage_kernel(%arg0: i32, %arg1: i32, %arg2: memref<128x128xi8, #tpu.memory_space<vmem>>, %arg3: memref<128x1xf32, #tpu.memory_space<vmem>>, %arg4: memref<128x128xbf16, #tpu.memory_space<vmem>>, %arg5: memref<128x128xbf16, #tpu.memory_space<vmem>>, %arg6: memref<128x128xbf16, #tpu.memory_space<vmem>>, %arg7: memref<2x128x128xbf16, #tpu.memory_space<vmem>>, %arg8: memref<2x128x128xbf16, #tpu.memory_space<vmem>>, %arg9: memref<3x1x128xf32, #tpu.memory_space<vmem>>, %arg10: memref<8x128xbf16, #tpu.memory_space<vmem>>, %arg11: memref<8x1xf32, #tpu.memory_space<vmem>>, %arg12: memref<128x128xbf16, #tpu.memory_space<vmem>>, %arg13: memref<1x128xf32, #tpu.memory_space<vmem>>, %arg14: memref<8x128xf32, #tpu.memory_space<vmem>>, %arg15: memref<2x128x128xbf16, #tpu.memory_space<vmem>>, %arg16: memref<8x128xf32, #tpu.memory_space<vmem>>) attributes {dimension_semantics = [#tpu.dimension_semantics<arbitrary>, #tpu.dimension_semantics<arbitrary>], iteration_bounds = array<i64: 3, 1>, scalar_prefetch = 0 : i64, scratch_operands = 2 : i64, tpu.core_type = #tpu.core_type<tc>, window_params = [{transform_indices = @transform_0, window_bounds = array<i64: 128, 128>}, {pipeline_mode = #tpu.pipeline_mode<synchronous>, transform_indices = @transform_1, window_bounds = array<i64: 128, 1>}, {pipeline_mode = #tpu.pipeline_mode<synchronous>, transform_indices = @transform_2, window_bounds = array<i64: 128, 128>}, {pipeline_mode = #tpu.pipeline_mode<synchronous>, transform_indices = @transform_3, window_bounds = array<i64: 128, 128>}, {pipeline_mode = #tpu.pipeline_mode<synchronous>, transform_indices = @transform_4, window_bounds = array<i64: 128, 128>}, {pipeline_mode = #tpu.pipeline_mode<synchronous>, transform_indices = @transform_5, window_bounds = array<i64: 2, 128, 128>}, {pipeline_mode = #tpu.pipeline_mode<synchronous>, transform_indices = @transform_6, window_bounds = array<i64: 2, 128, 128>}, {pipeline_mode = #tpu.pipeline_mode<synchronous>, transform_indices = @transform_7, window_bounds = array<i64: 3, 1, 128>}, {transform_indices = @transform_8, window_bounds = array<i64: 8, 128>}, {pipeline_mode = #tpu.pipeline_mode<synchronous>, transform_indices = @transform_9, window_bounds = array<i64: 8, 1>}, {pipeline_mode = #tpu.pipeline_mode<synchronous>, transform_indices = @transform_10, window_bounds = array<i64: 128, 128>}, {pipeline_mode = #tpu.pipeline_mode<synchronous>, transform_indices = @transform_11, window_bounds = array<i64: 1, 128>}, {pipeline_mode = #tpu.pipeline_mode<synchronous>, transform_indices = @transform_12, window_bounds = array<i64: 8, 128>}]} {
    %c128_i32 = arith.constant 128 : i32
    %0 = arith.muli %arg1, %c128_i32 : i32
    %1 = tpu.assume_multiple %0, 128 : i32
    %c2_i32 = arith.constant 2 : i32
    %2 = arith.remsi %arg0, %c2_i32 : i32
    %c1_i32 = arith.constant 1 : i32
    %3 = arith.addi %arg0, %c1_i32 : i32
    %c2_i32_0 = arith.constant 2 : i32
    %4 = arith.remsi %3, %c2_i32_0 : i32
    %c0 = arith.constant 0 : index
    %c0_1 = arith.constant 0 : index
    %5 = vector.load %arg2[%c0, %c0_1] : memref<128x128xi8, #tpu.memory_space<vmem>>, vector<128x128xi8>
    %6 = arith.sitofp %5 : vector<128x128xi8> to vector<128x128xbf16>
    %7 = arith.index_cast %1 : i32 to index
    %c0_2 = arith.constant 0 : index
    %8 = vector.load %arg3[%7, %c0_2] : memref<128x1xf32, #tpu.memory_space<vmem>>, vector<128x1xf32>
    %9 = arith.index_cast %arg0 : i32 to index
    %c0_3 = arith.constant 0 : index
    %c0_4 = arith.constant 0 : index
    %10 = vector.load %arg9[%9, %c0_3, %c0_4] : memref<3x1x128xf32, #tpu.memory_space<vmem>>, vector<1x1x128xf32>
    %11 = vector.shape_cast %10 : vector<1x1x128xf32> to vector<1x128xf32>
    %c0_i32 = arith.constant 0 : i32
    %12 = arith.cmpi eq, %arg0, %c0_i32 : i32
    %13 = arith.extui %12 : i1 to i32
    %c0_i32_5 = arith.constant 0 : i32
    %14 = arith.cmpi ne, %13, %c0_i32_5 : i32
    scf.if %14 {
      %c0_10 = arith.constant 0 : index
      %c0_11 = arith.constant 0 : index
      %21 = vector.load %arg4[%c0_10, %c0_11] : memref<128x128xbf16, #tpu.memory_space<vmem>>, vector<128x128xbf16>
      %cst = arith.constant dense<0.000000e+00> : vector<128x128xf32>
      %22 = tpu.matmul %6, %21, %cst {dimension_numbers = #tpu.dot_dimension_numbers<[1], [0], [0], [1], [0, 0, 1, 1], [], []>} : vector<128x128xbf16>, vector<128x128xbf16>, vector<128x128xf32> -> vector<128x128xf32>
      %23 = vector.broadcast %8 : vector<128x1xf32> to vector<128x128xf32>
      %24 = arith.mulf %22, %23 : vector<128x128xf32>
      %25 = arith.truncf %24 : vector<128x128xf32> to vector<128x128xbf16>
      %c0_12 = arith.constant 0 : index
      %c0_13 = arith.constant 0 : index
      %26 = vector.load %arg5[%c0_12, %c0_13] : memref<128x128xbf16, #tpu.memory_space<vmem>>, vector<128x128xbf16>
      %cst_14 = arith.constant dense<0.000000e+00> : vector<128x128xf32>
      %27 = tpu.matmul %25, %26, %cst_14 {dimension_numbers = #tpu.dot_dimension_numbers<[1], [0], [0], [1], [0, 0, 1, 1], [], []>} : vector<128x128xbf16>, vector<128x128xbf16>, vector<128x128xf32> -> vector<128x128xf32>
      %28 = arith.index_cast %1 : i32 to index
      %c0_15 = arith.constant 0 : index
      %29 = vector.load %arg4[%28, %c0_15] : memref<128x128xbf16, #tpu.memory_space<vmem>>, vector<128x128xbf16>
      %c0_16 = arith.constant 0 : index
      %c0_17 = arith.constant 0 : index
      %30 = vector.load %arg6[%c0_16, %c0_17] : memref<128x128xbf16, #tpu.memory_space<vmem>>, vector<128x128xbf16>
      %cst_18 = arith.constant dense<0.000000e+00> : vector<128x128xf32>
      %31 = tpu.matmul %29, %30, %cst_18 {dimension_numbers = #tpu.dot_dimension_numbers<[1], [0], [0], [1], [0, 0, 1, 1], [], []>} : vector<128x128xbf16>, vector<128x128xbf16>, vector<128x128xf32> -> vector<128x128xf32>
      %32 = arith.addf %27, %31 : vector<128x128xf32>
      %33 = vector.broadcast %11 : vector<1x128xf32> to vector<128x128xf32>
      %34 = arith.addf %32, %33 : vector<128x128xf32>
      %cst_19 = arith.constant 0.000000e+00 : f32
      %35 = vector.broadcast %cst_19 : f32 to vector<128x128xf32>
      %36 = arith.maximumf %34, %35 : vector<128x128xf32>
      %37 = arith.truncf %36 : vector<128x128xf32> to vector<128x128xbf16>
      %38 = arith.index_cast %4 : i32 to index
      %39 = arith.index_cast %1 : i32 to index
      %c0_20 = arith.constant 0 : index
      %40 = vector.load %arg15[%38, %39, %c0_20] : memref<2x128x128xbf16, #tpu.memory_space<vmem>>, vector<1x128x128xbf16>
      %41 = vector.shape_cast %40 : vector<1x128x128xbf16> to vector<128x128xbf16>
      %42 = vector.shape_cast %37 : vector<128x128xbf16> to vector<1x128x128xbf16>
      tpu.vector_store %arg15[%38, %39, %c0_20], %42 {strides = array<i32>} : memref<2x128x128xbf16, #tpu.memory_space<vmem>>, vector<1x128x128xbf16>,
    } else {
    }
    %c0_i32_6 = arith.constant 0 : i32
    %15 = arith.cmpi sgt, %arg0, %c0_i32_6 : i32
    %16 = arith.extui %15 : i1 to i32
    %c0_i32_7 = arith.constant 0 : i32
    %17 = arith.cmpi ne, %16, %c0_i32_7 : i32
    scf.if %17 {
      %c1_i32_10 = arith.constant 1 : i32
      %21 = arith.subi %arg0, %c1_i32_10 : i32
      %c0_i32_11 = arith.constant 0 : i32
      %22 = arith.maxsi %21, %c0_i32_11 : i32
      %23 = arith.index_cast %2 : i32 to index
      %c0_12 = arith.constant 0 : index
      %c0_13 = arith.constant 0 : index
      %24 = vector.load %arg15[%23, %c0_12, %c0_13] : memref<2x128x128xbf16, #tpu.memory_space<vmem>>, vector<1x128x128xbf16>
      %25 = vector.shape_cast %24 : vector<1x128x128xbf16> to vector<128x128xbf16>
      %cst = arith.constant dense<0.000000e+00> : vector<128x128xf32>
      %26 = tpu.matmul %6, %25, %cst {dimension_numbers = #tpu.dot_dimension_numbers<[1], [0], [0], [1], [0, 0, 1, 1], [], []>} : vector<128x128xbf16>, vector<128x128xbf16>, vector<128x128xf32> -> vector<128x128xf32>
      %27 = vector.broadcast %8 : vector<128x1xf32> to vector<128x128xf32>
      %28 = arith.mulf %26, %27 : vector<128x128xf32>
      %29 = arith.truncf %28 : vector<128x128xf32> to vector<128x128xbf16>
      %30 = arith.index_cast %22 : i32 to index
      %c0_14 = arith.constant 0 : index
      %c0_15 = arith.constant 0 : index
      %31 = vector.load %arg7[%30, %c0_14, %c0_15] : memref<2x128x128xbf16, #tpu.memory_space<vmem>>, vector<1x128x128xbf16>
      %32 = vector.shape_cast %31 : vector<1x128x128xbf16> to vector<128x128xbf16>
      %cst_16 = arith.constant dense<0.000000e+00> : vector<128x128xf32>
      %33 = tpu.matmul %29, %32, %cst_16 {dimension_numbers = #tpu.dot_dimension_numbers<[1], [0], [0], [1], [0, 0, 1, 1], [], []>} : vector<128x128xbf16>, vector<128x128xbf16>, vector<128x128xf32> -> vector<128x128xf32>
      %34 = arith.index_cast %2 : i32 to index
      %35 = arith.index_cast %1 : i32 to index
      %c0_17 = arith.constant 0 : index
      %36 = vector.load %arg15[%34, %35, %c0_17] : memref<2x128x128xbf16, #tpu.memory_space<vmem>>, vector<1x128x128xbf16>
      %37 = vector.shape_cast %36 : vector<1x128x128xbf16> to vector<128x128xbf16>
      %38 = arith.index_cast %22 : i32 to index
      %c0_18 = arith.constant 0 : index
      %c0_19 = arith.constant 0 : index
      %39 = vector.load %arg8[%38, %c0_18, %c0_19] : memref<2x128x128xbf16, #tpu.memory_space<vmem>>, vector<1x128x128xbf16>
      %40 = vector.shape_cast %39 : vector<1x128x128xbf16> to vector<128x128xbf16>
      %cst_20 = arith.constant dense<0.000000e+00> : vector<128x128xf32>
      %41 = tpu.matmul %37, %40, %cst_20 {dimension_numbers = #tpu.dot_dimension_numbers<[1], [0], [0], [1], [0, 0, 1, 1], [], []>} : vector<128x128xbf16>, vector<128x128xbf16>, vector<128x128xf32> -> vector<128x128xf32>
      %42 = arith.addf %33, %41 : vector<128x128xf32>
      %43 = vector.broadcast %11 : vector<1x128xf32> to vector<128x128xf32>
      %44 = arith.addf %42, %43 : vector<128x128xf32>
      %cst_21 = arith.constant 0.000000e+00 : f32
      %45 = vector.broadcast %cst_21 : f32 to vector<128x128xf32>
      %46 = arith.maximumf %44, %45 : vector<128x128xf32>
      %47 = arith.truncf %46 : vector<128x128xf32> to vector<128x128xbf16>
      %48 = arith.index_cast %4 : i32 to index
      %49 = arith.index_cast %1 : i32 to index
      %c0_22 = arith.constant 0 : index
      %50 = vector.load %arg15[%48, %49, %c0_22] : memref<2x128x128xbf16, #tpu.memory_space<vmem>>, vector<1x128x128xbf16>
      %51 = vector.shape_cast %50 : vector<1x128x128xbf16> to vector<128x128xbf16>
      %52 = vector.shape_cast %47 : vector<128x128xbf16> to vector<1x128x128xbf16>
      tpu.vector_store %arg15[%48, %49, %c0_22], %52 {strides = array<i32>} : memref<2x128x128xbf16, #tpu.memory_space<vmem>>, vector<1x128x128xbf16>,
    } else {
    }
    %c2_i32_8 = arith.constant 2 : i32
    %18 = arith.cmpi eq, %arg0, %c2_i32_8 : i32
    %19 = arith.extui %18 : i1 to i32
    %c0_i32_9 = arith.constant 0 : i32
    %20 = arith.cmpi ne, %19, %c0_i32_9 : i32
    scf.if %20 {
      %c0_i32_10 = arith.constant 0 : i32
      %21 = arith.cmpi eq, %arg1, %c0_i32_10 : i32
      %22 = arith.extui %21 : i1 to i32
      %c0_i32_11 = arith.constant 0 : i32
      %23 = arith.cmpi ne, %22, %c0_i32_11 : i32
      scf.if %23 {
        %cst_21 = arith.constant 0.000000e+00 : f32
        %36 = vector.broadcast %cst_21 : f32 to vector<8x128xf32>
        %c0_22 = arith.constant 0 : index
        %c0_23 = arith.constant 0 : index
        %37 = vector.load %arg16[%c0_22, %c0_23] : memref<8x128xf32, #tpu.memory_space<vmem>>, vector<8x128xf32>
        tpu.vector_store %arg16[%c0_22, %c0_23], %36 {strides = array<i32>} : memref<8x128xf32, #tpu.memory_space<vmem>>, vector<8x128xf32>,
      } else {
      }
      %24 = arith.index_cast %4 : i32 to index
      %25 = arith.index_cast %1 : i32 to index
      %c0_12 = arith.constant 0 : index
      %26 = vector.load %arg15[%24, %25, %c0_12] : memref<2x128x128xbf16, #tpu.memory_space<vmem>>, vector<1x128x128xbf16>
      %27 = vector.shape_cast %26 : vector<1x128x128xbf16> to vector<128x128xbf16>
      %c0_13 = arith.constant 0 : index
      %c0_14 = arith.constant 0 : index
      %28 = vector.load %arg16[%c0_13, %c0_14] : memref<8x128xf32, #tpu.memory_space<vmem>>, vector<8x128xf32>
      %c0_15 = arith.constant 0 : index
      %c0_16 = arith.constant 0 : index
      %29 = vector.load %arg10[%c0_15, %c0_16] : memref<8x128xbf16, #tpu.memory_space<vmem>>, vector<8x128xbf16>
      %cst = arith.constant dense<0.000000e+00> : vector<8x128xf32>
      %30 = tpu.matmul %29, %27, %cst {dimension_numbers = #tpu.dot_dimension_numbers<[1], [0], [0], [1], [0, 0, 1, 1], [], []>} : vector<8x128xbf16>, vector<128x128xbf16>, vector<8x128xf32> -> vector<8x128xf32>
      %31 = arith.addf %28, %30 : vector<8x128xf32>
      %c0_17 = arith.constant 0 : index
      %c0_18 = arith.constant 0 : index
      %32 = vector.load %arg16[%c0_17, %c0_18] : memref<8x128xf32, #tpu.memory_space<vmem>>, vector<8x128xf32>
      tpu.vector_store %arg16[%c0_17, %c0_18], %31 {strides = array<i32>} : memref<8x128xf32, #tpu.memory_space<vmem>>, vector<8x128xf32>,
      %c0_i32_19 = arith.constant 0 : i32
      %33 = arith.cmpi eq, %arg1, %c0_i32_19 : i32
      %34 = arith.extui %33 : i1 to i32
      %c0_i32_20 = arith.constant 0 : i32
      %35 = arith.cmpi ne, %34, %c0_i32_20 : i32
      scf.if %35 {
        %c0_21 = arith.constant 0 : index
        %c0_22 = arith.constant 0 : index
        %36 = vector.load %arg16[%c0_21, %c0_22] : memref<8x128xf32, #tpu.memory_space<vmem>>, vector<8x128xf32>
        %c0_23 = arith.constant 0 : index
        %c0_24 = arith.constant 0 : index
        %37 = vector.load %arg11[%c0_23, %c0_24] : memref<8x1xf32, #tpu.memory_space<vmem>>, vector<8x1xf32>
        %38 = vector.broadcast %37 : vector<8x1xf32> to vector<8x128xf32>
        %39 = arith.mulf %36, %38 : vector<8x128xf32>
        %40 = arith.truncf %39 : vector<8x128xf32> to vector<8x128xbf16>
        %c0_25 = arith.constant 0 : index
        %c0_26 = arith.constant 0 : index
        %41 = vector.load %arg12[%c0_25, %c0_26] : memref<128x128xbf16, #tpu.memory_space<vmem>>, vector<128x128xbf16>
        %cst_27 = arith.constant dense<0.000000e+00> : vector<8x128xf32>
        %42 = tpu.matmul %40, %41, %cst_27 {dimension_numbers = #tpu.dot_dimension_numbers<[1], [0], [0], [1], [0, 0, 1, 1], [], []>} : vector<8x128xbf16>, vector<128x128xbf16>, vector<8x128xf32> -> vector<8x128xf32>
        %c0_28 = arith.constant 0 : index
        %c0_29 = arith.constant 0 : index
        %43 = vector.load %arg13[%c0_28, %c0_29] : memref<1x128xf32, #tpu.memory_space<vmem>>, vector<1x128xf32>
        %44 = vector.broadcast %43 : vector<1x128xf32> to vector<8x128xf32>
        %45 = arith.addf %42, %44 : vector<8x128xf32>
        %c0_30 = arith.constant 0 : index
        %c0_31 = arith.constant 0 : index
        %46 = vector.load %arg14[%c0_30, %c0_31] : memref<8x128xf32, #tpu.memory_space<vmem>>, vector<8x128xf32>
        tpu.vector_store %arg14[%c0_30, %c0_31], %45 {strides = array<i32>} : memref<8x128xf32, #tpu.memory_space<vmem>>, vector<8x128xf32>,
      } else {
      }
    } else {
    }
    return
  }
  func.func @transform_0(%arg0: i32, %arg1: i32) -> (i32, i32) {
    %c0_i32 = arith.constant 0 : i32
    %c0_i32_0 = arith.constant 0 : i32
    return %arg1, %c0_i32 : i32, i32
  }
  func.func @transform_1(%arg0: i32, %arg1: i32) -> (i32, i32) {
    %c0_i32 = arith.constant 0 : i32
    %c0_i32_0 = arith.constant 0 : i32
    %c0_i32_1 = arith.constant 0 : i32
    return %c0_i32, %c0_i32_0 : i32, i32
  }
  func.func @transform_2(%arg0: i32, %arg1: i32) -> (i32, i32) {
    %c0_i32 = arith.constant 0 : i32
    %c0_i32_0 = arith.constant 0 : i32
    %c0_i32_1 = arith.constant 0 : i32
    return %c0_i32, %c0_i32_0 : i32, i32
  }
  func.func @transform_3(%arg0: i32, %arg1: i32) -> (i32, i32) {
    %c0_i32 = arith.constant 0 : i32
    %c0_i32_0 = arith.constant 0 : i32
    %c0_i32_1 = arith.constant 0 : i32
    return %c0_i32, %c0_i32_0 : i32, i32
  }
  func.func @transform_4(%arg0: i32, %arg1: i32) -> (i32, i32) {
    %c0_i32 = arith.constant 0 : i32
    %c0_i32_0 = arith.constant 0 : i32
    %c0_i32_1 = arith.constant 0 : i32
    return %c0_i32, %c0_i32_0 : i32, i32
  }
  func.func @transform_5(%arg0: i32, %arg1: i32) -> (i32, i32, i32) {
    %c0_i32 = arith.constant 0 : i32
    %c0_i32_0 = arith.constant 0 : i32
    %c0_i32_1 = arith.constant 0 : i32
    %c0_i32_2 = arith.constant 0 : i32
    return %c0_i32, %c0_i32_0, %c0_i32_1 : i32, i32, i32
  }
  func.func @transform_6(%arg0: i32, %arg1: i32) -> (i32, i32, i32) {
    %c0_i32 = arith.constant 0 : i32
    %c0_i32_0 = arith.constant 0 : i32
    %c0_i32_1 = arith.constant 0 : i32
    %c0_i32_2 = arith.constant 0 : i32
    return %c0_i32, %c0_i32_0, %c0_i32_1 : i32, i32, i32
  }
  func.func @transform_7(%arg0: i32, %arg1: i32) -> (i32, i32, i32) {
    %c0_i32 = arith.constant 0 : i32
    %c0_i32_0 = arith.constant 0 : i32
    %c0_i32_1 = arith.constant 0 : i32
    %c0_i32_2 = arith.constant 0 : i32
    return %c0_i32, %c0_i32_0, %c0_i32_1 : i32, i32, i32
  }
  func.func @transform_8(%arg0: i32, %arg1: i32) -> (i32, i32) {
    %c0_i32 = arith.constant 0 : i32
    %c0_i32_0 = arith.constant 0 : i32
    return %c0_i32, %arg1 : i32, i32
  }
  func.func @transform_9(%arg0: i32, %arg1: i32) -> (i32, i32) {
    %c0_i32 = arith.constant 0 : i32
    %c0_i32_0 = arith.constant 0 : i32
    %c0_i32_1 = arith.constant 0 : i32
    return %c0_i32, %c0_i32_0 : i32, i32
  }
  func.func @transform_10(%arg0: i32, %arg1: i32) -> (i32, i32) {
    %c0_i32 = arith.constant 0 : i32
    %c0_i32_0 = arith.constant 0 : i32
    %c0_i32_1 = arith.constant 0 : i32
    return %c0_i32, %c0_i32_0 : i32, i32
  }
  func.func @transform_11(%arg0: i32, %arg1: i32) -> (i32, i32) {
    %c0_i32 = arith.constant 0 : i32
    %c0_i32_0 = arith.constant 0 : i32
    %c0_i32_1 = arith.constant 0 : i32
    return %c0_i32, %c0_i32_0 : i32, i32
  }
  func.func @transform_12(%arg0: i32, %arg1: i32) -> (i32, i32) {
    %c0_i32 = arith.constant 0 : i32
    %c0_i32_0 = arith.constant 0 : i32
    %c0_i32_1 = arith.constant 0 : i32
    return %c0_i32, %c0_i32_0 : i32, i32
  }
}

</mosaic_0001>

<llo_original>
// kernel: sage_model_forward.1
$region0: #{sage_model_forward.1}
  #allocation0 [shape = 'u32[]', space=smem, size = 0x4, offset = 0x4, fixed_abs, tag = 'smem constant byte address 0x4 - core index']
  #allocation1 [shape = 'u32[72,128]{1,0:T(1,128)}', space=vmem, size = 0x9000, scoped, tag = 'internal scratch']
  #allocation2 [shape = 'bf16[2,128,128]{2,1,0:T(8,128)(2,1)}', space=vmem, size = 0x10000, scoped, tag = 'scratch operand']
  #allocation3 [shape = 'f32[8,128]{1,0:T(8,128)}', space=vmem, size = 0x1000, scoped, tag = 'scratch operand']
  %s0 = inlined_call_operand.vmem [shape: s8[128,128], index: 0, kind: input, shape index: {}]
  %s1 = inlined_call_operand.vmem [shape: f32[128,1], index: 1, kind: input, shape index: {}]
  %s2 = inlined_call_operand.vmem [shape: bf16[128,128], index: 2, kind: input, shape index: {}]
  %s3 = inlined_call_operand.vmem [shape: bf16[128,128], index: 3, kind: input, shape index: {}]
  %s4 = inlined_call_operand.vmem [shape: bf16[128,128], index: 4, kind: input, shape index: {}]
  %s5 = inlined_call_operand.vmem [shape: bf16[2,128,128], index: 5, kind: input, shape index: {}]
  %s6 = inlined_call_operand.vmem [shape: bf16[2,128,128], index: 6, kind: input, shape index: {}]
  %s7 = inlined_call_operand.vmem [shape: f32[3,1,128], index: 7, kind: input, shape index: {}]
  %s8 = inlined_call_operand.vmem [shape: bf16[8,128], index: 8, kind: input, shape index: {}]
  %s9 = inlined_call_operand.vmem [shape: f32[8,1], index: 9, kind: input, shape index: {}]
  %s10 = inlined_call_operand.vmem [shape: bf16[128,128], index: 10, kind: input, shape index: {}]
  %s11 = inlined_call_operand.vmem [shape: f32[1,128], index: 11, kind: input, shape index: {}]
  %s12 = inlined_call_operand.vmem [shape: f32[8,128], index: 12, kind: output, shape index: {}]
  %s13 = sld [smem:[#allocation0]]
  $region101: #{sage_model_forward.1} parent=0
    _
  %s15 = ssub.s32 1, %s13
  %s16 = scalar_select 0, %s15, %s13
  loop: start=0, step=1, limit=5
  $region2: #{sage_model_forward.1} parent=0 // loop_pre_header
    _
  $region3: #{sage_model_forward.1} parent=0 // loop_header
    %s18 = sphi 0, %s22
    %p19 = scmp.ge.s32.totalorder %s18, 5
    %s25 = sphi 0, %s37
    %s26 = sphi 0, %s33
    %s27 = sphi 0, %s25
    %s28 = sphi 0, %s26
    %s29 = sphi 0, %s27
    %s30 = sphi 0, %s28
    %s40 = sphi 0, %s42
    %s43 = sphi 0, %s40
    %s44 = sphi 0, %s43
    %s60 = sphi 0, %s44
    %s64 = sphi 0, %s64
    %s66 = sphi 0, %s64
    %s67 = sphi 0, %s66
    %s81 = sphi 0, %s67
    %s85 = sphi 0, %s85
    %s87 = sphi 0, %s85
    %s88 = sphi 0, %s87
    %s102 = sphi 0, %s88
    %s106 = sphi 0, %s106
    %s108 = sphi 0, %s106
    %s109 = sphi 0, %s108
    %s123 = sphi 0, %s109
    %s127 = sphi 0, %s127
    %s129 = sphi 0, %s127
    %s130 = sphi 0, %s129
    %s144 = sphi 0, %s130
    %s148 = sphi 0, %s148
    %s150 = sphi 0, %s148
    %s151 = sphi 0, %s150
    %s165 = sphi 0, %s151
    %s169 = sphi 0, %s169
    %s171 = sphi 0, %s169
    %s172 = sphi 0, %s171
    %s186 = sphi 0, %s172
    %s190 = sphi 0, %s190
    %s192 = sphi 0, %s190
    %s193 = sphi 0, %s192
    %s207 = sphi 0, %s193
    %s213 = sphi 0, %s215
    %s216 = sphi 0, %s213
    %s217 = sphi 0, %s216
    %s233 = sphi 0, %s217
    %s237 = sphi 0, %s237
    %s239 = sphi 0, %s237
    %s240 = sphi 0, %s239
    %s254 = sphi 0, %s240
    %s258 = sphi 0, %s258
    %s260 = sphi 0, %s258
    %s261 = sphi 0, %s260
    %s275 = sphi 0, %s261
    %s279 = sphi 0, %s279
    %s281 = sphi 0, %s279
    %s282 = sphi 0, %s281
    %s296 = sphi 0, %s282
    %s300 = sphi 0, %s300
    %s302 = sphi 0, %s300
    %s303 = sphi 0, %s302
    %s317 = sphi 0, %s303
  $region4: #{sage_model_forward.1} parent=0 // loop_header_branch
    %21 = sbr.rel (%p19) target = $region8
  $region5: #{sage_model_forward.1} parent=0 // loop_body
    %s23 = ssub.s32 %s18, 1
    %s24 = ssub.s32 %s18, 2
    %s31 = sadd.s32 1, %s26
    %p32 = scmp.ge.s32.totalorder %s31, 1
    %s33 = scalar_select %p32, 0, %s31
    %s34 = sadd.s32 1, %s25
    %s35 = scalar_select %p32, %s34, %s25
    %p36 = scmp.ge.s32.totalorder %s35, 3
    %s37 = scalar_select %p36, 0, %s35
    %s38 = ssub.s32 %s26, %s33
    %p39 = scmp.eq.s32.totalorder %s38, 0
    %s41 = sadd.s32 %s40, 1
    %s42 = scalar_select %p39, %s40, %s41
    %p45 = pneg %p39
    %p46 = scmp.eq.s32.totalorder %s18, 2
    %p47 = por %p45, %p46
    %p48 = scmp.ne.s32.totalorder %s40, %s43
    %p49 = scmp.eq.s32.totalorder %s18, 0
    %p50 = por %p48, %p49
    %p51 = scmp.ne.s32.totalorder %s40, %s43
    %p52 = scmp.eq.s32.totalorder %s23, 2
    %p53 = por %p51, %p52
    %p54 = scmp.ne.s32.totalorder %s43, %s44
    %p55 = scmp.eq.s32.totalorder %s23, 0
    %p56 = por %p54, %p55
    %p57 = scmp.ne.s32.totalorder %s43, %s44
    %p58 = scmp.eq.s32.totalorder %s24, 2
    %p59 = por %p57, %p58
    %p61 = scmp.ne.s32.totalorder %s44, %s60
    %p62 = scmp.eq.s32.totalorder %s24, 0
    %p63 = por %p61, %p62
    %s65 = sadd.s32 %s64, 1
    %p68 = scmp.eq.s32.totalorder %s18, 2
    %p69 = scmp.ne.s32.totalorder %s64, %s66
    %p70 = scmp.eq.s32.totalorder %s18, 0
    %p71 = por %p69, %p70
    %p72 = scmp.ne.s32.totalorder %s64, %s66
    %p73 = scmp.eq.s32.totalorder %s23, 2
    %p74 = por %p72, %p73
    %p75 = scmp.ne.s32.totalorder %s66, %s67
    %p76 = scmp.eq.s32.totalorder %s23, 0
    %p77 = por %p75, %p76
    %p78 = scmp.ne.s32.totalorder %s66, %s67
    %p79 = scmp.eq.s32.totalorder %s24, 2
    %p80 = por %p78, %p79
    %p82 = scmp.ne.s32.totalorder %s67, %s81
    %p83 = scmp.eq.s32.totalorder %s24, 0
    %p84 = por %p82, %p83
    %s86 = sadd.s32 %s85, 1
    %p89 = scmp.eq.s32.totalorder %s18, 2
    %p90 = scmp.ne.s32.totalorder %s85, %s87
    %p91 = scmp.eq.s32.totalorder %s18, 0
    %p92 = por %p90, %p91
    %p93 = scmp.ne.s32.totalorder %s85, %s87
    %p94 = scmp.eq.s32.totalorder %s23, 2
    %p95 = por %p93, %p94
    %p96 = scmp.ne.s32.totalorder %s87, %s88
    %p97 = scmp.eq.s32.totalorder %s23, 0
    %p98 = por %p96, %p97
    %p99 = scmp.ne.s32.totalorder %s87, %s88
    %p100 = scmp.eq.s32.totalorder %s24, 2
    %p101 = por %p99, %p100
    %p103 = scmp.ne.s32.totalorder %s88, %s102
    %p104 = scmp.eq.s32.totalorder %s24, 0
    %p105 = por %p103, %p104
    %s107 = sadd.s32 %s106, 1
    %p110 = scmp.eq.s32.totalorder %s18, 2
    %p111 = scmp.ne.s32.totalorder %s106, %s108
    %p112 = scmp.eq.s32.totalorder %s18, 0
    %p113 = por %p111, %p112
    %p114 = scmp.ne.s32.totalorder %s106, %s108
    %p115 = scmp.eq.s32.totalorder %s23, 2
    %p116 = por %p114, %p115
    %p117 = scmp.ne.s32.totalorder %s108, %s109
    %p118 = scmp.eq.s32.totalorder %s23, 0
    %p119 = por %p117, %p118
    %p120 = scmp.ne.s32.totalorder %s108, %s109
    %p121 = scmp.eq.s32.totalorder %s24, 2
    %p122 = por %p120, %p121
    %p124 = scmp.ne.s32.totalorder %s109, %s123
    %p125 = scmp.eq.s32.totalorder %s24, 0
    %p126 = por %p124, %p125
    %s128 = sadd.s32 %s127, 1
    %p131 = scmp.eq.s32.totalorder %s18, 2
    %p132 = scmp.ne.s32.totalorder %s127, %s129
    %p133 = scmp.eq.s32.totalorder %s18, 0
    %p134 = por %p132, %p133
    %p135 = scmp.ne.s32.totalorder %s127, %s129
    %p136 = scmp.eq.s32.totalorder %s23, 2
    %p137 = por %p135, %p136
    %p138 = scmp.ne.s32.totalorder %s129, %s130
    %p139 = scmp.eq.s32.totalorder %s23, 0
    %p140 = por %p138, %p139
    %p141 = scmp.ne.s32.totalorder %s129, %s130
    %p142 = scmp.eq.s32.totalorder %s24, 2
    %p143 = por %p141, %p142
    %p145 = scmp.ne.s32.totalorder %s130, %s144
    %p146 = scmp.eq.s32.totalorder %s24, 0
    %p147 = por %p145, %p146
    %s149 = sadd.s32 %s148, 1
    %p152 = scmp.eq.s32.totalorder %s18, 2
    %p153 = scmp.ne.s32.totalorder %s148, %s150
    %p154 = scmp.eq.s32.totalorder %s18, 0
    %p155 = por %p153, %p154
    %p156 = scmp.ne.s32.totalorder %s148, %s150
    %p157 = scmp.eq.s32.totalorder %s23, 2
    %p158 = por %p156, %p157
    %p159 = scmp.ne.s32.totalorder %s150, %s151
    %p160 = scmp.eq.s32.totalorder %s23, 0
    %p161 = por %p159, %p160
    %p162 = scmp.ne.s32.totalorder %s150, %s151
    %p163 = scmp.eq.s32.totalorder %s24, 2
    %p164 = por %p162, %p163
    %p166 = scmp.ne.s32.totalorder %s151, %s165
    %p167 = scmp.eq.s32.totalorder %s24, 0
    %p168 = por %p166, %p167
    %s170 = sadd.s32 %s169, 1
    %p173 = scmp.eq.s32.totalorder %s18, 2
    %p174 = scmp.ne.s32.totalorder %s169, %s171
    %p175 = scmp.eq.s32.totalorder %s18, 0
    %p176 = por %p174, %p175
    %p177 = scmp.ne.s32.totalorder %s169, %s171
    %p178 = scmp.eq.s32.totalorder %s23, 2
    %p179 = por %p177, %p178
    %p180 = scmp.ne.s32.totalorder %s171, %s172
    %p181 = scmp.eq.s32.totalorder %s23, 0
    %p182 = por %p180, %p181
    %p183 = scmp.ne.s32.totalorder %s171, %s172
    %p184 = scmp.eq.s32.totalorder %s24, 2
    %p185 = por %p183, %p184
    %p187 = scmp.ne.s32.totalorder %s172, %s186
    %p188 = scmp.eq.s32.totalorder %s24, 0
    %p189 = por %p187, %p188
    %s191 = sadd.s32 %s190, 1
    %p194 = scmp.eq.s32.totalorder %s18, 2
    %p195 = scmp.ne.s32.totalorder %s190, %s192
    %p196 = scmp.eq.s32.totalorder %s18, 0
    %p197 = por %p195, %p196
    %p198 = scmp.ne.s32.totalorder %s190, %s192
    %p199 = scmp.eq.s32.totalorder %s23, 2
    %p200 = por %p198, %p199
    %p201 = scmp.ne.s32.totalorder %s192, %s193
    %p202 = scmp.eq.s32.totalorder %s23, 0
    %p203 = por %p201, %p202
    %p204 = scmp.ne.s32.totalorder %s192, %s193
    %p205 = scmp.eq.s32.totalorder %s24, 2
    %p206 = por %p204, %p205
    %p208 = scmp.ne.s32.totalorder %s193, %s207
    %p209 = scmp.eq.s32.totalorder %s24, 0
    %p210 = por %p208, %p209
    %s211 = ssub.s32 %s26, %s33
    %p212 = scmp.eq.s32.totalorder %s211, 0
    %s214 = sadd.s32 %s213, 1
    %s215 = scalar_select %p212, %s213, %s214
    %p218 = pneg %p212
    %p219 = scmp.eq.s32.totalorder %s18, 2
    %p220 = por %p218, %p219
    %p221 = scmp.ne.s32.totalorder %s213, %s216
    %p222 = scmp.eq.s32.totalorder %s18, 0
    %p223 = por %p221, %p222
    %p224 = scmp.ne.s32.totalorder %s213, %s216
    %p225 = scmp.eq.s32.totalorder %s23, 2
    %p226 = por %p224, %p225
    %p227 = scmp.ne.s32.totalorder %s216, %s217
    %p228 = scmp.eq.s32.totalorder %s23, 0
    %p229 = por %p227, %p228
    %p230 = scmp.ne.s32.totalorder %s216, %s217
    %p231 = scmp.eq.s32.totalorder %s24, 2
    %p232 = por %p230, %p231
    %p234 = scmp.ne.s32.totalorder %s217, %s233
    %p235 = scmp.eq.s32.totalorder %s24, 0
    %p236 = por %p234, %p235
    %s238 = sadd.s32 %s237, 1
    %p241 = scmp.eq.s32.totalorder %s18, 2
    %p242 = scmp.ne.s32.totalorder %s237, %s239
    %p243 = scmp.eq.s32.totalorder %s18, 0
    %p244 = por %p242, %p243
    %p245 = scmp.ne.s32.totalorder %s237, %s239
    %p246 = scmp.eq.s32.totalorder %s23, 2
    %p247 = por %p245, %p246
    %p248 = scmp.ne.s32.totalorder %s239, %s240
    %p249 = scmp.eq.s32.totalorder %s23, 0
    %p250 = por %p248, %p249
    %p251 = scmp.ne.s32.totalorder %s239, %s240
    %p252 = scmp.eq.s32.totalorder %s24, 2
    %p253 = por %p251, %p252
    %p255 = scmp.ne.s32.totalorder %s240, %s254
    %p256 = scmp.eq.s32.totalorder %s24, 0
    %p257 = por %p255, %p256
    %s259 = sadd.s32 %s258, 1
    %p262 = scmp.eq.s32.totalorder %s18, 2
    %p263 = scmp.ne.s32.totalorder %s258, %s260
    %p264 = scmp.eq.s32.totalorder %s18, 0
    %p265 = por %p263, %p264
    %p266 = scmp.ne.s32.totalorder %s258, %s260
    %p267 = scmp.eq.s32.totalorder %s23, 2
    %p268 = por %p266, %p267
    %p269 = scmp.ne.s32.totalorder %s260, %s261
    %p270 = scmp.eq.s32.totalorder %s23, 0
    %p271 = por %p269, %p270
    %p272 = scmp.ne.s32.totalorder %s260, %s261
    %p273 = scmp.eq.s32.totalorder %s24, 2
    %p274 = por %p272, %p273
    %p276 = scmp.ne.s32.totalorder %s261, %s275
    %p277 = scmp.eq.s32.totalorder %s24, 0
    %p278 = por %p276, %p277
    %s280 = sadd.s32 %s279, 1
    %p283 = scmp.eq.s32.totalorder %s18, 2
    %p284 = scmp.ne.s32.totalorder %s279, %s281
    %p285 = scmp.eq.s32.totalorder %s18, 0
    %p286 = por %p284, %p285
    %p287 = scmp.ne.s32.totalorder %s279, %s281
    %p288 = scmp.eq.s32.totalorder %s23, 2
    %p289 = por %p287, %p288
    %p290 = scmp.ne.s32.totalorder %s281, %s282
    %p291 = scmp.eq.s32.totalorder %s23, 0
    %p292 = por %p290, %p291
    %p293 = scmp.ne.s32.totalorder %s281, %s282
    %p294 = scmp.eq.s32.totalorder %s24, 2
    %p295 = por %p293, %p294
    %p297 = scmp.ne.s32.totalorder %s282, %s296
    %p298 = scmp.eq.s32.totalorder %s24, 0
    %p299 = por %p297, %p298
    %s301 = sadd.s32 %s300, 1
    %p304 = scmp.eq.s32.totalorder %s18, 2
    %p305 = scmp.ne.s32.totalorder %s300, %s302
    %p306 = scmp.eq.s32.totalorder %s18, 0
    %p307 = por %p305, %p306
    %p308 = scmp.ne.s32.totalorder %s300, %s302
    %p309 = scmp.eq.s32.totalorder %s23, 2
    %p310 = por %p308, %p309
    %p311 = scmp.ne.s32.totalorder %s302, %s303
    %p312 = scmp.eq.s32.totalorder %s23, 0
    %p313 = por %p311, %p312
    %p314 = scmp.ne.s32.totalorder %s302, %s303
    %p315 = scmp.eq.s32.totalorder %s24, 2
    %p316 = por %p314, %p315
    %p318 = scmp.ne.s32.totalorder %s303, %s317
    %p319 = scmp.eq.s32.totalorder %s24, 0
    %p320 = por %p318, %p319
    %p321 = scmp.le.s32.totalorder 1, %s18
    %p322 = scmp.lt.s32.totalorder %s18, 4
    %p323 = pnand %p321, %p322
    %p324 = pneg %p323
    // Predicated region
    $region9: #{sage_model_forward.1} parent=5 // pred_check
      _
    $region10: #{sage_model_forward.1} parent=5 // pred_check_branch
      %326 = sbr.rel (%p323) target = $region12
    $region11: #{sage_model_forward.1} parent=5 // pred_region
      %s327 = ssub.s32 %s18, 1
      // Predicated region
      $region13: #{sage_model_forward.1} parent=11 // pred_check
        %p328 = pneg %p56
      $region14: #{sage_model_forward.1} parent=11 // pred_check_branch
        %330 = sbr.rel (%p328) target = $region16
      $region15: #{sage_model_forward.1} parent=11 // pred_region
        %s331 = smul.u32 16, %s28
        %p332 = scmp.lt.s32.totalorder %s331, 15
        %s333 = scalar_select %p332, %s331, 15
        %s334 = smul.addr %s333, 2
        %s335 = scalar_lea.vmem %s0, %s334
        %s336 = smul.u32 16, %s28
      $region16: #{sage_model_forward.1} parent=11 // pred_fallthru
        _
      // Predicated region
      $region17: #{sage_model_forward.1} parent=11 // pred_check
        %p337 = pneg %p77
      $region18: #{sage_model_forward.1} parent=11 // pred_check_branch
        %339 = sbr.rel (%p337) target = $region20
      $region19: #{sage_model_forward.1} parent=11 // pred_region
        _
      $region20: #{sage_model_forward.1} parent=11 // pred_fallthru
        _
      // Predicated region
      $region21: #{sage_model_forward.1} parent=11 // pred_check
        %p340 = pneg %p98
      $region22: #{sage_model_forward.1} parent=11 // pred_check_branch
        %342 = sbr.rel (%p340) target = $region24
      $region23: #{sage_model_forward.1} parent=11 // pred_region
        _
      $region24: #{sage_model_forward.1} parent=11 // pred_fallthru
        _
      // Predicated region
      $region25: #{sage_model_forward.1} parent=11 // pred_check
        %p343 = pneg %p119
      $region26: #{sage_model_forward.1} parent=11 // pred_check_branch
        %345 = sbr.rel (%p343) target = $region28
      $region27: #{sage_model_forward.1} parent=11 // pred_region
        _
      $region28: #{sage_model_forward.1} parent=11 // pred_fallthru
        _
      // Predicated region
      $region29: #{sage_model_forward.1} parent=11 // pred_check
        %p346 = pneg %p140
      $region30: #{sage_model_forward.1} parent=11 // pred_check_branch
        %348 = sbr.rel (%p346) target = $region32
      $region31: #{sage_model_forward.1} parent=11 // pred_region
        _
      $region32: #{sage_model_forward.1} parent=11 // pred_fallthru
        _
      // Predicated region
      $region33: #{sage_model_forward.1} parent=11 // pred_check
        %p349 = pneg %p161
      $region34: #{sage_model_forward.1} parent=11 // pred_check_branch
        %351 = sbr.rel (%p349) target = $region36
      $region35: #{sage_model_forward.1} parent=11 // pred_region
        _
      $region36: #{sage_model_forward.1} parent=11 // pred_fallthru
        _
      // Predicated region
      $region37: #{sage_model_forward.1} parent=11 // pred_check
        %p352 = pneg %p182
      $region38: #{sage_model_forward.1} parent=11 // pred_check_branch
        %354 = sbr.rel (%p352) target = $region40
      $region39: #{sage_model_forward.1} parent=11 // pred_region
        _
      $region40: #{sage_model_forward.1} parent=11 // pred_fallthru
        _
      // Predicated region
      $region41: #{sage_model_forward.1} parent=11 // pred_check
        %p355 = pneg %p203
      $region42: #{sage_model_forward.1} parent=11 // pred_check_branch
        %357 = sbr.rel (%p355) target = $region44
      $region43: #{sage_model_forward.1} parent=11 // pred_region
        _
      $region44: #{sage_model_forward.1} parent=11 // pred_fallthru
        _
      // Predicated region
      $region45: #{sage_model_forward.1} parent=11 // pred_check
        %p358 = pneg %p229
      $region46: #{sage_model_forward.1} parent=11 // pred_check_branch
        %360 = sbr.rel (%p358) target = $region48
      $region47: #{sage_model_forward.1} parent=11 // pred_region
        %p361 = scmp.lt.s32.totalorder %s28, 0
        %s362 = scalar_select %p361, %s28, 0
        %s363 = smul.addr %s362, 4
        %s364 = scalar_lea.vmem %s8, %s363
      $region48: #{sage_model_forward.1} parent=11 // pred_fallthru
        _
      // Predicated region
      $region49: #{sage_model_forward.1} parent=11 // pred_check
        %p365 = pneg %p250
      $region50: #{sage_model_forward.1} parent=11 // pred_check_branch
        %367 = sbr.rel (%p365) target = $region52
      $region51: #{sage_model_forward.1} parent=11 // pred_region
        _
      $region52: #{sage_model_forward.1} parent=11 // pred_fallthru
        _
      // Predicated region
      $region53: #{sage_model_forward.1} parent=11 // pred_check
        %p368 = pneg %p271
      $region54: #{sage_model_forward.1} parent=11 // pred_check_branch
        %370 = sbr.rel (%p368) target = $region56
      $region55: #{sage_model_forward.1} parent=11 // pred_region
        _
      $region56: #{sage_model_forward.1} parent=11 // pred_fallthru
        _
      // Predicated region
      $region57: #{sage_model_forward.1} parent=11 // pred_check
        %p371 = pneg %p292
      $region58: #{sage_model_forward.1} parent=11 // pred_check_branch
        %373 = sbr.rel (%p371) target = $region60
      $region59: #{sage_model_forward.1} parent=11 // pred_region
        _
      $region60: #{sage_model_forward.1} parent=11 // pred_fallthru
        _
    $region12: #{sage_model_forward.1} parent=5 // pred_fallthru
      _
    %p374 = scmp.lt.s32.totalorder %s18, 3
    // Predicated region
    $region61: #{sage_model_forward.1} parent=5 // pred_check
      %p375 = pneg %p374
    $region62: #{sage_model_forward.1} parent=5 // pred_check_branch
      %377 = sbr.rel (%p375) target = $region64
    $region63: #{sage_model_forward.1} parent=5 // pred_region
      _
    $region64: #{sage_model_forward.1} parent=5 // pred_fallthru
      _
    %p378 = scmp.le.s32.totalorder 1, %s18
    %p379 = scmp.lt.s32.totalorder %s18, 4
    %p380 = pnand %p378, %p379
    %p381 = pneg %p380
    // Predicated region
    $region65: #{sage_model_forward.1} parent=5 // pred_check
      _
    $region66: #{sage_model_forward.1} parent=5 // pred_check_branch
      %383 = sbr.rel (%p380) target = $region68
    $region67: #{sage_model_forward.1} parent=5 // pred_region
      %s384 = ssub.s32 %s18, 1
      %s385 = smul.u32 16, %s28
      %p386 = scmp.lt.s32.totalorder %s385, 15
      %s387 = scalar_select %p386, %s385, 15
      %s388 = smul.addr %s387, 2
      %s389 = scalar_lea.vmem %s0, %s388
      %p390 = pneg %p56
      %p391 = pneg %p53
      %p392 = pneg %p77
      %p393 = pneg %p74
      %p394 = pneg %p98
      %p395 = pneg %p95
      %p396 = pneg %p119
      %p397 = pneg %p116
      %p398 = pneg %p140
      %p399 = pneg %p137
      %p400 = pneg %p161
      %p401 = pneg %p158
      %p402 = pneg %p182
      %p403 = pneg %p179
      %p404 = pneg %p203
      %p405 = pneg %p200
      %p406 = scmp.lt.s32.totalorder %s28, 0
      %s407 = scalar_select %p406, %s28, 0
      %s408 = smul.addr %s407, 4
      %s409 = scalar_lea.vmem %s8, %s408
      %p410 = pneg %p229
      %p411 = pneg %p226
      %p412 = pneg %p250
      %p413 = pneg %p247
      %p414 = pneg %p271
      %p415 = pneg %p268
      %p416 = pneg %p292
      %p417 = pneg %p289
      %p418 = pneg %p313
      %p419 = pneg %p310
      %s420 = smul.u32 16, %s28
      %p421 = scmp.lt.s32.totalorder %s420, 15
      %s422 = scalar_select %p421, %s420, 15
      %s423 = smul.addr %s422, 2
      %s424 = scalar_lea.vmem %s0, %s423
      %s425 = smul.u32 16, %s28
      %p426 = scmp.lt.s32.totalorder %s28, 0
      %s427 = scalar_select %p426, %s28, 0
      %s428 = smul.addr %s427, 4
      %s429 = scalar_lea.vmem %s8, %s428
      %s430 = smul.u32 %s28, 128
      %p431 = scmp.lt.s32.totalorder %s27, 0
      %s432 = ssub.s32 0, %s27
      %s433 = scalar_select %p431, %s432, %s27
      %s434 = sand.u32 %s433, 1
      %s435 = ssub.s32 0, %s434
      %s436 = scalar_select %p431, %s435, %s434
      %s437 = sadd.s32 %s27, 1
      %p438 = scmp.lt.s32.totalorder %s437, 0
      %s439 = ssub.s32 0, %s437
      %s440 = scalar_select %p438, %s439, %s437
      %s441 = sand.u32 %s440, 1
      %s442 = ssub.s32 0, %s441
      %s443 = scalar_select %p438, %s442, %s441
      %v444 = vld [vmem:[%s424] sm:$0x3]
      %v445 = vld [vmem:[%s424 + $0x2] sm:$0x3]
      %v446 = vld [vmem:[%s424 + $0x4] sm:$0x3]
      %v447 = vld [vmem:[%s424 + $0x6] sm:$0x3]
      %v448 = vld [vmem:[%s424 + $0x8] sm:$0x3]
      %v449 = vld [vmem:[%s424 + $0xa] sm:$0x3]
      %v450 = vld [vmem:[%s424 + $0xc] sm:$0x3]
      %v451 = vld [vmem:[%s424 + $0xe] sm:$0x3]
      %v452 = vld [vmem:[%s424 + $0x10] sm:$0x3]
      %v453 = vld [vmem:[%s424 + $0x12] sm:$0x3]
      %v454 = vld [vmem:[%s424 + $0x14] sm:$0x3]
      %v455 = vld [vmem:[%s424 + $0x16] sm:$0x3]
      %v456 = vld [vmem:[%s424 + $0x18] sm:$0x3]
      %v457 = vld [vmem:[%s424 + $0x1a] sm:$0x3]
      %v458 = vld [vmem:[%s424 + $0x1c] sm:$0x3]
      %v459 = vld [vmem:[%s424 + $0x1e] sm:$0x3]
      %v460 = vunpack.c.0.s8 %v444
      %v461 = vunpack.c.0.s8 %v445
      %v462 = vunpack.c.0.s8 %v446
      %v463 = vunpack.c.0.s8 %v447
      %v464 = vunpack.c.0.s8 %v448
      %v465 = vunpack.c.0.s8 %v449
      %v466 = vunpack.c.0.s8 %v450
      %v467 = vunpack.c.0.s8 %v451
      %v468 = vunpack.c.0.s8 %v452
      %v469 = vunpack.c.0.s8 %v453
      %v470 = vunpack.c.0.s8 %v454
      %v471 = vunpack.c.0.s8 %v455
      %v472 = vunpack.c.0.s8 %v456
      %v473 = vunpack.c.0.s8 %v457
      %v474 = vunpack.c.0.s8 %v458
      %v475 = vunpack.c.0.s8 %v459
      %v476 = vcvt.s32.f32 %v460
      %v477 = vcvt.s32.f32 %v461
      %v478 = vcvt.s32.f32 %v462
      %v479 = vcvt.s32.f32 %v463
      %v480 = vcvt.s32.f32 %v464
      %v481 = vcvt.s32.f32 %v465
      %v482 = vcvt.s32.f32 %v466
      %v483 = vcvt.s32.f32 %v467
      %v484 = vcvt.s32.f32 %v468
      %v485 = vcvt.s32.f32 %v469
      %v486 = vcvt.s32.f32 %v470
      %v487 = vcvt.s32.f32 %v471
      %v488 = vcvt.s32.f32 %v472
      %v489 = vcvt.s32.f32 %v473
      %v490 = vcvt.s32.f32 %v474
      %v491 = vcvt.s32.f32 %v475
      %v492 = vpack.c.bf16 %v477, %v476
      %v493 = vpack.c.bf16 %v479, %v478
      %v494 = vpack.c.bf16 %v481, %v480
      %v495 = vpack.c.bf16 %v483, %v482
      %v496 = vpack.c.bf16 %v485, %v484
      %v497 = vpack.c.bf16 %v487, %v486
      %v498 = vpack.c.bf16 %v489, %v488
      %v499 = vpack.c.bf16 %v491, %v490
      %s500 = scalar_lea.vmem %s1, %s430
      %v501 = vld [vmem:[%s500] sm:$0xff]
      %v502 = vld [vmem:[%s500 + $0x8] sm:$0xff]
      %v503 = vld [vmem:[%s500 + $0x10] sm:$0xff]
      %v504 = vld [vmem:[%s500 + $0x18] sm:$0xff]
      %v505 = vld [vmem:[%s500 + $0x20] sm:$0xff]
      %v506 = vld [vmem:[%s500 + $0x28] sm:$0xff]
      %v507 = vld [vmem:[%s500 + $0x30] sm:$0xff]
      %v508 = vld [vmem:[%s500 + $0x38] sm:$0xff]
      %v509 = vld [vmem:[%s500 + $0x40] sm:$0xff]
      %v510 = vld [vmem:[%s500 + $0x48] sm:$0xff]
      %v511 = vld [vmem:[%s500 + $0x50] sm:$0xff]
      %v512 = vld [vmem:[%s500 + $0x58] sm:$0xff]
      %v513 = vld [vmem:[%s500 + $0x60] sm:$0xff]
      %v514 = vld [vmem:[%s500 + $0x68] sm:$0xff]
      %v515 = vld [vmem:[%s500 + $0x70] sm:$0xff]
      %v516 = vld [vmem:[%s500 + $0x78] sm:$0xff]
      %s517 = scalar_lea.vmem %s7, %s27
      %v518 = vld [vmem:[%s517] sm:$0x1]
      %p519 = scmp.eq.s32.totalorder %s27, 0
      // Predicated region
      $region69: #{sage_model_forward.1} parent=67 // pred_check
        %p520 = pneg %p519
      $region70: #{sage_model_forward.1} parent=67 // pred_check_branch
        %522 = sbr.rel (%p520) target = $region72
      $region71: #{sage_model_forward.1} parent=67 // pred_region
        %v523 = vld [vmem:[%s2] sm:$0xf]
        %v524 = vld [vmem:[%s2 + $0x4] sm:$0xf]
        %v525 = vld [vmem:[%s2 + $0x8] sm:$0xf]
        %v526 = vld [vmem:[%s2 + $0xc] sm:$0xf]
        %v527 = vld [vmem:[%s2 + $0x10] sm:$0xf]
        %v528 = vld [vmem:[%s2 + $0x14] sm:$0xf]
        %v529 = vld [vmem:[%s2 + $0x18] sm:$0xf]
        %v530 = vld [vmem:[%s2 + $0x1c] sm:$0xf]
        %v531 = vld [vmem:[%s2 + $0x20] sm:$0xf]
        %v532 = vld [vmem:[%s2 + $0x24] sm:$0xf]
        %v533 = vld [vmem:[%s2 + $0x28] sm:$0xf]
        %v534 = vld [vmem:[%s2 + $0x2c] sm:$0xf]
        %v535 = vld [vmem:[%s2 + $0x30] sm:$0xf]
        %v536 = vld [vmem:[%s2 + $0x34] sm:$0xf]
        %v537 = vld [vmem:[%s2 + $0x38] sm:$0xf]
        %v538 = vld [vmem:[%s2 + $0x3c] sm:$0xf]
        %v555 = vunpack.c.l.b16 %v523
        %v556 = vunpack.c.l.b16 %v524
        %v557 = vunpack.c.l.b16 %v525
        %v558 = vunpack.c.l.b16 %v526
        %v559 = vunpack.c.l.b16 %v527
        %v560 = vunpack.c.l.b16 %v528
        %v561 = vunpack.c.l.b16 %v529
        %v562 = vunpack.c.l.b16 %v530
        %v563 = vunpack.c.l.b16 %v531
        %v564 = vunpack.c.l.b16 %v532
        %v565 = vunpack.c.l.b16 %v533
        %v566 = vunpack.c.l.b16 %v534
        %v567 = vunpack.c.l.b16 %v535
        %v568 = vunpack.c.l.b16 %v536
        %v569 = vunpack.c.l.b16 %v537
        %v570 = vunpack.c.l.b16 %v538
        %v571 = vpack.c.b16 %v556, %v555
        %v572 = vpack.c.b16 %v558, %v557
        %v573 = vpack.c.b16 %v560, %v559
        %v574 = vpack.c.b16 %v562, %v561
        %v575 = vpack.c.b16 %v564, %v563
        %v576 = vpack.c.b16 %v566, %v565
        %v577 = vpack.c.b16 %v568, %v567
        %v578 = vpack.c.b16 %v570, %v569
        %587 = vmatpush.bf16.msra.mxu0 %v578
        %588 = vmatpush.bf16.msra.mxu0 %v577
        %589 = vmatpush.bf16.msra.mxu0 %v576
        %590 = vmatpush.bf16.msra.mxu0 %v575
        %591 = vmatpush.bf16.msra.mxu0 %v574
        %592 = vmatpush.bf16.msra.mxu0 %v573
        %593 = vmatpush.bf16.msra.mxu0 %v572
        %594 = vmatpush.bf16.msra.mxu0 %v571
        %595 = vmatmul.bf16.gmra.mxu0 %v492
        %v596 = vpop.f32.mrf.mxu0
        %v597 = vadd.f32 0.0, %v596
        %v598 = vpop.f32.mrf.mxu0
        %v599 = vadd.f32 0.0, %v598
        %600 = vmatmul.bf16.gmra.mxu0 %v493
        %v601 = vpop.f32.mrf.mxu0
        %v602 = vadd.f32 0.0, %v601
        %v603 = vpop.f32.mrf.mxu0
        %v604 = vadd.f32 0.0, %v603
        %605 = vmatmul.bf16.gmra.mxu0 %v494
        %v606 = vpop.f32.mrf.mxu0
        %v607 = vadd.f32 0.0, %v606
        %v608 = vpop.f32.mrf.mxu0
        %v609 = vadd.f32 0.0, %v608
        %610 = vmatmul.bf16.gmra.mxu0 %v495
        %v611 = vpop.f32.mrf.mxu0
        %v612 = vadd.f32 0.0, %v611
        %v613 = vpop.f32.mrf.mxu0
        %v614 = vadd.f32 0.0, %v613
        %615 = vmatmul.bf16.gmra.mxu0 %v496
        %v616 = vpop.f32.mrf.mxu0
        %v617 = vadd.f32 0.0, %v616
        %v618 = vpop.f32.mrf.mxu0
        %v619 = vadd.f32 0.0, %v618
        %620 = vmatmul.bf16.gmra.mxu0 %v497
        %v621 = vpop.f32.mrf.mxu0
        %v622 = vadd.f32 0.0, %v621
        %v623 = vpop.f32.mrf.mxu0
        %v624 = vadd.f32 0.0, %v623
        %625 = vmatmul.bf16.gmra.mxu0 %v498
        %v626 = vpop.f32.mrf.mxu0
        %v627 = vadd.f32 0.0, %v626
        %v628 = vpop.f32.mrf.mxu0
        %v629 = vadd.f32 0.0, %v628
        %630 = vmatmul.bf16.gmra.mxu0 %v499
        %v631 = vpop.f32.mrf.mxu0
        %v632 = vadd.f32 0.0, %v631
        %v633 = vpop.f32.mrf.mxu0
        %v634 = vadd.f32 0.0, %v633
        %635 = vdwg.mxu0
        %637 = vset.pattern.permute.xlu0 0
        %638 = vperm.xlu0 %637, %v501
        %v639 = vpop.permute.xlu0 %638
        %642 = vset.pattern.permute.xlu0 0
        %643 = vperm.xlu0 %642, %v502
        %v644 = vpop.permute.xlu0 %643
        %647 = vset.pattern.permute.xlu0 0
        %648 = vperm.xlu0 %647, %v503
        %v649 = vpop.permute.xlu0 %648
        %652 = vset.pattern.permute.xlu0 0
        %653 = vperm.xlu0 %652, %v504
        %v654 = vpop.permute.xlu0 %653
        %657 = vset.pattern.permute.xlu0 0
        %658 = vperm.xlu0 %657, %v505
        %v659 = vpop.permute.xlu0 %658
        %662 = vset.pattern.permute.xlu0 0
        %663 = vperm.xlu0 %662, %v506
        %v664 = vpop.permute.xlu0 %663
        %667 = vset.pattern.permute.xlu0 0
        %668 = vperm.xlu0 %667, %v507
        %v669 = vpop.permute.xlu0 %668
        %672 = vset.pattern.permute.xlu0 0
        %673 = vperm.xlu0 %672, %v508
        %v674 = vpop.permute.xlu0 %673
        %677 = vset.pattern.permute.xlu0 0
        %678 = vperm.xlu0 %677, %v509
        %v679 = vpop.permute.xlu0 %678
        %682 = vset.pattern.permute.xlu0 0
        %683 = vperm.xlu0 %682, %v510
        %v684 = vpop.permute.xlu0 %683
        %687 = vset.pattern.permute.xlu0 0
        %688 = vperm.xlu0 %687, %v511
        %v689 = vpop.permute.xlu0 %688
        %692 = vset.pattern.permute.xlu0 0
        %693 = vperm.xlu0 %692, %v512
        %v694 = vpop.permute.xlu0 %693
        %697 = vset.pattern.permute.xlu0 0
        %698 = vperm.xlu0 %697, %v513
        %v699 = vpop.permute.xlu0 %698
        %702 = vset.pattern.permute.xlu0 0
        %703 = vperm.xlu0 %702, %v514
        %v704 = vpop.permute.xlu0 %703
        %707 = vset.pattern.permute.xlu0 0
        %708 = vperm.xlu0 %707, %v515
        %v709 = vpop.permute.xlu0 %708
        %712 = vset.pattern.permute.xlu0 0
        %713 = vperm.xlu0 %712, %v516
        %v714 = vpop.permute.xlu0 %713
        %v716 = vmul.f32 %v597, %v639
        %v717 = vmul.f32 %v599, %v644
        %v718 = vmul.f32 %v602, %v649
        %v719 = vmul.f32 %v604, %v654
        %v720 = vmul.f32 %v607, %v659
        %v721 = vmul.f32 %v609, %v664
        %v722 = vmul.f32 %v612, %v669
        %v723 = vmul.f32 %v614, %v674
        %v724 = vmul.f32 %v617, %v679
        %v725 = vmul.f32 %v619, %v684
        %v726 = vmul.f32 %v622, %v689
        %v727 = vmul.f32 %v624, %v694
        %v728 = vmul.f32 %v627, %v699
        %v729 = vmul.f32 %v629, %v704
        %v730 = vmul.f32 %v632, %v709
        %v731 = vmul.f32 %v634, %v714
        %v732 = vpack.c.bf16 %v717, %v716
        %v733 = vpack.c.bf16 %v719, %v718
        %v734 = vpack.c.bf16 %v721, %v720
        %v735 = vpack.c.bf16 %v723, %v722
        %v736 = vpack.c.bf16 %v725, %v724
        %v737 = vpack.c.bf16 %v727, %v726
        %v738 = vpack.c.bf16 %v729, %v728
        %v739 = vpack.c.bf16 %v731, %v730
        %v740 = vld [vmem:[%s3] sm:$0xf]
        %v741 = vld [vmem:[%s3 + $0x4] sm:$0xf]
        %v742 = vld [vmem:[%s3 + $0x8] sm:$0xf]
        %v743 = vld [vmem:[%s3 + $0xc] sm:$0xf]
        %v744 = vld [vmem:[%s3 + $0x10] sm:$0xf]
        %v745 = vld [vmem:[%s3 + $0x14] sm:$0xf]
        %v746 = vld [vmem:[%s3 + $0x18] sm:$0xf]
        %v747 = vld [vmem:[%s3 + $0x1c] sm:$0xf]
        %v748 = vld [vmem:[%s3 + $0x20] sm:$0xf]
        %v749 = vld [vmem:[%s3 + $0x24] sm:$0xf]
        %v750 = vld [vmem:[%s3 + $0x28] sm:$0xf]
        %v751 = vld [vmem:[%s3 + $0x2c] sm:$0xf]
        %v752 = vld [vmem:[%s3 + $0x30] sm:$0xf]
        %v753 = vld [vmem:[%s3 + $0x34] sm:$0xf]
        %v754 = vld [vmem:[%s3 + $0x38] sm:$0xf]
        %v755 = vld [vmem:[%s3 + $0x3c] sm:$0xf]
        %s756 = sshra.s32 %s430, 3
        %s757 = sand.u32 %s430, 7
        %s758 = smul.addr %s756, 4
        %s759 = scalar_lea.vmem %s2, %s758
        %v760 = vld [vmem:[%s759] sm:$0xf]
        %v761 = vld [vmem:[%s759 + $0x4] sm:$0xf]
        %v762 = vld [vmem:[%s759 + $0x8] sm:$0xf]
        %v763 = vld [vmem:[%s759 + $0xc] sm:$0xf]
        %v764 = vld [vmem:[%s759 + $0x10] sm:$0xf]
        %v765 = vld [vmem:[%s759 + $0x14] sm:$0xf]
        %v766 = vld [vmem:[%s759 + $0x18] sm:$0xf]
        %v767 = vld [vmem:[%s759 + $0x1c] sm:$0xf]
        %v768 = vld [vmem:[%s759 + $0x20] sm:$0xf]
        %v769 = vld [vmem:[%s759 + $0x24] sm:$0xf]
        %v770 = vld [vmem:[%s759 + $0x28] sm:$0xf]
        %v771 = vld [vmem:[%s759 + $0x2c] sm:$0xf]
        %v772 = vld [vmem:[%s759 + $0x30] sm:$0xf]
        %v773 = vld [vmem:[%s759 + $0x34] sm:$0xf]
        %v774 = vld [vmem:[%s759 + $0x38] sm:$0xf]
        %v775 = vld [vmem:[%s759 + $0x3c] sm:$0xf]
        %v776 = vld [vmem:[%s4] sm:$0xf]
        %v777 = vld [vmem:[%s4 + $0x4] sm:$0xf]
        %v778 = vld [vmem:[%s4 + $0x8] sm:$0xf]
        %v779 = vld [vmem:[%s4 + $0xc] sm:$0xf]
        %v780 = vld [vmem:[%s4 + $0x10] sm:$0xf]
        %v781 = vld [vmem:[%s4 + $0x14] sm:$0xf]
        %v782 = vld [vmem:[%s4 + $0x18] sm:$0xf]
        %v783 = vld [vmem:[%s4 + $0x1c] sm:$0xf]
        %v784 = vld [vmem:[%s4 + $0x20] sm:$0xf]
        %v785 = vld [vmem:[%s4 + $0x24] sm:$0xf]
        %v786 = vld [vmem:[%s4 + $0x28] sm:$0xf]
        %v787 = vld [vmem:[%s4 + $0x2c] sm:$0xf]
        %v788 = vld [vmem:[%s4 + $0x30] sm:$0xf]
        %v789 = vld [vmem:[%s4 + $0x34] sm:$0xf]
        %v790 = vld [vmem:[%s4 + $0x38] sm:$0xf]
        %v791 = vld [vmem:[%s4 + $0x3c] sm:$0xf]
        %v808 = vunpack.c.l.b16 %v760
        %v809 = vunpack.c.l.b16 %v761
        %v810 = vunpack.c.l.b16 %v762
        %v811 = vunpack.c.l.b16 %v763
        %v812 = vunpack.c.l.b16 %v764
        %v813 = vunpack.c.l.b16 %v765
        %v814 = vunpack.c.l.b16 %v766
        %v815 = vunpack.c.l.b16 %v767
        %v816 = vunpack.c.l.b16 %v768
        %v817 = vunpack.c.l.b16 %v769
        %v818 = vunpack.c.l.b16 %v770
        %v819 = vunpack.c.l.b16 %v771
        %v820 = vunpack.c.l.b16 %v772
        %v821 = vunpack.c.l.b16 %v773
        %v822 = vunpack.c.l.b16 %v774
        %v823 = vunpack.c.l.b16 %v775
        %v824 = vpack.c.b16 %v809, %v808
        %v825 = vpack.c.b16 %v811, %v810
        %v826 = vpack.c.b16 %v813, %v812
        %v827 = vpack.c.b16 %v815, %v814
        %v828 = vpack.c.b16 %v817, %v816
        %v829 = vpack.c.b16 %v819, %v818
        %v830 = vpack.c.b16 %v821, %v820
        %v831 = vpack.c.b16 %v823, %v822
        %v856 = vunpack.c.l.b16 %v776
        %v857 = vunpack.c.l.b16 %v777
        %v858 = vunpack.c.l.b16 %v778
        %v859 = vunpack.c.l.b16 %v779
        %v860 = vunpack.c.l.b16 %v780
        %v861 = vunpack.c.l.b16 %v781
        %v862 = vunpack.c.l.b16 %v782
        %v863 = vunpack.c.l.b16 %v783
        %v864 = vunpack.c.l.b16 %v784
        %v865 = vunpack.c.l.b16 %v785
        %v866 = vunpack.c.l.b16 %v786
        %v867 = vunpack.c.l.b16 %v787
        %v868 = vunpack.c.l.b16 %v788
        %v869 = vunpack.c.l.b16 %v789
        %v870 = vunpack.c.l.b16 %v790
        %v871 = vunpack.c.l.b16 %v791
        %v872 = vpack.c.b16 %v857, %v856
        %v873 = vpack.c.b16 %v859, %v858
        %v874 = vpack.c.b16 %v861, %v860
        %v875 = vpack.c.b16 %v863, %v862
        %v876 = vpack.c.b16 %v865, %v864
        %v877 = vpack.c.b16 %v867, %v866
        %v878 = vpack.c.b16 %v869, %v868
        %v879 = vpack.c.b16 %v871, %v870
        %888 = vmatpush.bf16.msra.mxu0 %v879
        %889 = vmatpush.bf16.msra.mxu0 %v878
        %890 = vmatpush.bf16.msra.mxu0 %v877
        %891 = vmatpush.bf16.msra.mxu0 %v876
        %892 = vmatpush.bf16.msra.mxu0 %v875
        %893 = vmatpush.bf16.msra.mxu0 %v874
        %894 = vmatpush.bf16.msra.mxu0 %v873
        %895 = vmatpush.bf16.msra.mxu0 %v872
        %896 = vmatmul.bf16.gmra.mxu0 %v824
        %v897 = vpop.f32.mrf.mxu0
        %v898 = vadd.f32 0.0, %v897
        %v899 = vpop.f32.mrf.mxu0
        %v900 = vadd.f32 0.0, %v899
        %901 = vmatmul.bf16.gmra.mxu0 %v825
        %v902 = vpop.f32.mrf.mxu0
        %v903 = vadd.f32 0.0, %v902
        %v904 = vpop.f32.mrf.mxu0
        %v905 = vadd.f32 0.0, %v904
        %906 = vmatmul.bf16.gmra.mxu0 %v826
        %v907 = vpop.f32.mrf.mxu0
        %v908 = vadd.f32 0.0, %v907
        %v909 = vpop.f32.mrf.mxu0
        %v910 = vadd.f32 0.0, %v909
        %911 = vmatmul.bf16.gmra.mxu0 %v827
        %v912 = vpop.f32.mrf.mxu0
        %v913 = vadd.f32 0.0, %v912
        %v914 = vpop.f32.mrf.mxu0
        %v915 = vadd.f32 0.0, %v914
        %916 = vmatmul.bf16.gmra.mxu0 %v828
        %v917 = vpop.f32.mrf.mxu0
        %v918 = vadd.f32 0.0, %v917
        %v919 = vpop.f32.mrf.mxu0
        %v920 = vadd.f32 0.0, %v919
        %921 = vmatmul.bf16.gmra.mxu0 %v829
        %v922 = vpop.f32.mrf.mxu0
        %v923 = vadd.f32 0.0, %v922
        %v924 = vpop.f32.mrf.mxu0
        %v925 = vadd.f32 0.0, %v924
        %926 = vmatmul.bf16.gmra.mxu0 %v830
        %v927 = vpop.f32.mrf.mxu0
        %v928 = vadd.f32 0.0, %v927
        %v929 = vpop.f32.mrf.mxu0
        %v930 = vadd.f32 0.0, %v929
        %931 = vmatmul.bf16.gmra.mxu0 %v831
        %v932 = vpop.f32.mrf.mxu0
        %v933 = vadd.f32 0.0, %v932
        %v934 = vpop.f32.mrf.mxu0
        %v935 = vadd.f32 0.0, %v934
        %936 = vdwg.mxu0
        %v953 = vunpack.c.l.b16 %v740
        %v954 = vunpack.c.l.b16 %v741
        %v955 = vunpack.c.l.b16 %v742
        %v956 = vunpack.c.l.b16 %v743
        %v957 = vunpack.c.l.b16 %v744
        %v958 = vunpack.c.l.b16 %v745
        %v959 = vunpack.c.l.b16 %v746
        %v960 = vunpack.c.l.b16 %v747
        %v961 = vunpack.c.l.b16 %v748
        %v962 = vunpack.c.l.b16 %v749
        %v963 = vunpack.c.l.b16 %v750
        %v964 = vunpack.c.l.b16 %v751
        %v965 = vunpack.c.l.b16 %v752
        %v966 = vunpack.c.l.b16 %v753
        %v967 = vunpack.c.l.b16 %v754
        %v968 = vunpack.c.l.b16 %v755
        %v969 = vpack.c.b16 %v954, %v953
        %v970 = vpack.c.b16 %v956, %v955
        %v971 = vpack.c.b16 %v958, %v957
        %v972 = vpack.c.b16 %v960, %v959
        %v973 = vpack.c.b16 %v962, %v961
        %v974 = vpack.c.b16 %v964, %v963
        %v975 = vpack.c.b16 %v966, %v965
        %v976 = vpack.c.b16 %v968, %v967
        %985 = vmatpush.bf16.msra.mxu0 %v976
        %986 = vmatpush.bf16.msra.mxu0 %v975
        %987 = vmatpush.bf16.msra.mxu0 %v974
        %988 = vmatpush.bf16.msra.mxu0 %v973
        %989 = vmatpush.bf16.msra.mxu0 %v972
        %990 = vmatpush.bf16.msra.mxu0 %v971
        %991 = vmatpush.bf16.msra.mxu0 %v970
        %992 = vmatpush.bf16.msra.mxu0 %v969
        %993 = vmatmul.bf16.gmra.mxu0 %v732
        %v994 = vpop.f32.mrf.mxu0
        %v995 = vadd.f32 %v898, %v994
        %v996 = vpop.f32.mrf.mxu0
        %v997 = vadd.f32 %v900, %v996
        %998 = vmatmul.bf16.gmra.mxu0 %v733
        %v999 = vpop.f32.mrf.mxu0
        %v1000 = vadd.f32 %v903, %v999
        %v1001 = vpop.f32.mrf.mxu0
        %v1002 = vadd.f32 %v905, %v1001
        %1003 = vmatmul.bf16.gmra.mxu0 %v734
        %v1004 = vpop.f32.mrf.mxu0
        %v1005 = vadd.f32 %v908, %v1004
        %v1006 = vpop.f32.mrf.mxu0
        %v1007 = vadd.f32 %v910, %v1006
        %1008 = vmatmul.bf16.gmra.mxu0 %v735
        %v1009 = vpop.f32.mrf.mxu0
        %v1010 = vadd.f32 %v913, %v1009
        %v1011 = vpop.f32.mrf.mxu0
        %v1012 = vadd.f32 %v915, %v1011
        %1013 = vmatmul.bf16.gmra.mxu0 %v736
        %v1014 = vpop.f32.mrf.mxu0
        %v1015 = vadd.f32 %v918, %v1014
        %v1016 = vpop.f32.mrf.mxu0
        %v1017 = vadd.f32 %v920, %v1016
        %1018 = vmatmul.bf16.gmra.mxu0 %v737
        %v1019 = vpop.f32.mrf.mxu0
        %v1020 = vadd.f32 %v923, %v1019
        %v1021 = vpop.f32.mrf.mxu0
        %v1022 = vadd.f32 %v925, %v1021
        %1023 = vmatmul.bf16.gmra.mxu0 %v738
        %v1024 = vpop.f32.mrf.mxu0
        %v1025 = vadd.f32 %v928, %v1024
        %v1026 = vpop.f32.mrf.mxu0
        %v1027 = vadd.f32 %v930, %v1026
        %1028 = vmatmul.bf16.gmra.mxu0 %v739
        %v1029 = vpop.f32.mrf.mxu0
        %v1030 = vadd.f32 %v933, %v1029
        %v1031 = vpop.f32.mrf.mxu0
        %v1032 = vadd.f32 %v935, %v1031
        %1033 = vdwg.mxu0
        %v1035 = vperm.slane %v518, 0
        %v1037 = vadd.f32 %v995, %v1035
        %v1038 = vadd.f32 %v997, %v1035
        %v1039 = vadd.f32 %v1000, %v1035
        %v1040 = vadd.f32 %v1002, %v1035
        %v1041 = vadd.f32 %v1005, %v1035
        %v1042 = vadd.f32 %v1007, %v1035
        %v1043 = vadd.f32 %v1010, %v1035
        %v1044 = vadd.f32 %v1012, %v1035
        %v1045 = vadd.f32 %v1015, %v1035
        %v1046 = vadd.f32 %v1017, %v1035
        %v1047 = vadd.f32 %v1020, %v1035
        %v1048 = vadd.f32 %v1022, %v1035
        %v1049 = vadd.f32 %v1025, %v1035
        %v1050 = vadd.f32 %v1027, %v1035
        %v1051 = vadd.f32 %v1030, %v1035
        %v1052 = vadd.f32 %v1032, %v1035
        %v1053 = vmax.f32 %v1037, 0.0
        %v1054 = vmax.f32 %v1038, 0.0
        %v1055 = vmax.f32 %v1039, 0.0
        %v1056 = vmax.f32 %v1040, 0.0
        %v1057 = vmax.f32 %v1041, 0.0
        %v1058 = vmax.f32 %v1042, 0.0
        %v1059 = vmax.f32 %v1043, 0.0
        %v1060 = vmax.f32 %v1044, 0.0
        %v1061 = vmax.f32 %v1045, 0.0
        %v1062 = vmax.f32 %v1046, 0.0
        %v1063 = vmax.f32 %v1047, 0.0
        %v1064 = vmax.f32 %v1048, 0.0
        %v1065 = vmax.f32 %v1049, 0.0
        %v1066 = vmax.f32 %v1050, 0.0
        %v1067 = vmax.f32 %v1051, 0.0
        %v1068 = vmax.f32 %v1052, 0.0
        %v1069 = vpack.c.bf16 %v1053, %v1053
        %v1070 = vpack.c.bf16 %v1054, %v1054
        %v1071 = vpack.c.bf16 %v1055, %v1055
        %v1072 = vpack.c.bf16 %v1056, %v1056
        %v1073 = vpack.c.bf16 %v1057, %v1057
        %v1074 = vpack.c.bf16 %v1058, %v1058
        %v1075 = vpack.c.bf16 %v1059, %v1059
        %v1076 = vpack.c.bf16 %v1060, %v1060
        %v1077 = vpack.c.bf16 %v1061, %v1061
        %v1078 = vpack.c.bf16 %v1062, %v1062
        %v1079 = vpack.c.bf16 %v1063, %v1063
        %v1080 = vpack.c.bf16 %v1064, %v1064
        %v1081 = vpack.c.bf16 %v1065, %v1065
        %v1082 = vpack.c.bf16 %v1066, %v1066
        %v1083 = vpack.c.bf16 %v1067, %v1067
        %v1084 = vpack.c.bf16 %v1068, %v1068
        %s1085 = smul.u32 %s443, 16
        %s1086 = sadd.s32 %s756, %s1085
        %s1087 = smul.addr %s1086, 4
        %s1088 = scalar_lea.vmem [#allocation2], %s1087
        %1089 = vst [vmem:[%s1088] sm:$0xf] %v1069
        %1090 = vst [vmem:[%s1088 + $0x4] sm:$0xf] %v1070
        %1091 = vst [vmem:[%s1088 + $0x8] sm:$0xf] %v1071
        %1092 = vst [vmem:[%s1088 + $0xc] sm:$0xf] %v1072
        %1093 = vst [vmem:[%s1088 + $0x10] sm:$0xf] %v1073
        %1094 = vst [vmem:[%s1088 + $0x14] sm:$0xf] %v1074
        %1095 = vst [vmem:[%s1088 + $0x18] sm:$0xf] %v1075
        %1096 = vst [vmem:[%s1088 + $0x1c] sm:$0xf] %v1076
        %1097 = vst [vmem:[%s1088 + $0x20] sm:$0xf] %v1077
        %1098 = vst [vmem:[%s1088 + $0x24] sm:$0xf] %v1078
        %1099 = vst [vmem:[%s1088 + $0x28] sm:$0xf] %v1079
        %1100 = vst [vmem:[%s1088 + $0x2c] sm:$0xf] %v1080
        %1101 = vst [vmem:[%s1088 + $0x30] sm:$0xf] %v1081
        %1102 = vst [vmem:[%s1088 + $0x34] sm:$0xf] %v1082
        %1103 = vst [vmem:[%s1088 + $0x38] sm:$0xf] %v1083
        %1104 = vst [vmem:[%s1088 + $0x3c] sm:$0xf] %v1084
      $region72: #{sage_model_forward.1} parent=67 // pred_fallthru
        _
      %p1105 = scmp.gt.s32.totalorder %s27, 0
      // Predicated region
      $region73: #{sage_model_forward.1} parent=67 // pred_check
        %p1106 = pneg %p1105
      $region74: #{sage_model_forward.1} parent=67 // pred_check_branch
        %1108 = sbr.rel (%p1106) target = $region76
      $region75: #{sage_model_forward.1} parent=67 // pred_region
        %s1109 = ssub.s32 %s27, 1
        %p1110 = scmp.gt.s32.totalorder %s1109, 0
        %s1111 = scalar_select %p1110, %s1109, 0
        %s1112 = smul.u32 %s436, 16
        %s1113 = smul.addr %s1112, 4
        %s1114 = scalar_lea.vmem [#allocation2], %s1113
        %v1115 = vld [vmem:[%s1114] sm:$0xf]
        %v1116 = vld [vmem:[%s1114 + $0x4] sm:$0xf]
        %v1117 = vld [vmem:[%s1114 + $0x8] sm:$0xf]
        %v1118 = vld [vmem:[%s1114 + $0xc] sm:$0xf]
        %v1119 = vld [vmem:[%s1114 + $0x10] sm:$0xf]
        %v1120 = vld [vmem:[%s1114 + $0x14] sm:$0xf]
        %v1121 = vld [vmem:[%s1114 + $0x18] sm:$0xf]
        %v1122 = vld [vmem:[%s1114 + $0x1c] sm:$0xf]
        %v1123 = vld [vmem:[%s1114 + $0x20] sm:$0xf]
        %v1124 = vld [vmem:[%s1114 + $0x24] sm:$0xf]
        %v1125 = vld [vmem:[%s1114 + $0x28] sm:$0xf]
        %v1126 = vld [vmem:[%s1114 + $0x2c] sm:$0xf]
        %v1127 = vld [vmem:[%s1114 + $0x30] sm:$0xf]
        %v1128 = vld [vmem:[%s1114 + $0x34] sm:$0xf]
        %v1129 = vld [vmem:[%s1114 + $0x38] sm:$0xf]
        %v1130 = vld [vmem:[%s1114 + $0x3c] sm:$0xf]
        %v1147 = vunpack.c.l.b16 %v1115
        %v1148 = vunpack.c.l.b16 %v1116
        %v1149 = vunpack.c.l.b16 %v1117
        %v1150 = vunpack.c.l.b16 %v1118
        %v1151 = vunpack.c.l.b16 %v1119
        %v1152 = vunpack.c.l.b16 %v1120
        %v1153 = vunpack.c.l.b16 %v1121
        %v1154 = vunpack.c.l.b16 %v1122
        %v1155 = vunpack.c.l.b16 %v1123
        %v1156 = vunpack.c.l.b16 %v1124
        %v1157 = vunpack.c.l.b16 %v1125
        %v1158 = vunpack.c.l.b16 %v1126
        %v1159 = vunpack.c.l.b16 %v1127
        %v1160 = vunpack.c.l.b16 %v1128
        %v1161 = vunpack.c.l.b16 %v1129
        %v1162 = vunpack.c.l.b16 %v1130
        %v1163 = vpack.c.b16 %v1148, %v1147
        %v1164 = vpack.c.b16 %v1150, %v1149
        %v1165 = vpack.c.b16 %v1152, %v1151
        %v1166 = vpack.c.b16 %v1154, %v1153
        %v1167 = vpack.c.b16 %v1156, %v1155
        %v1168 = vpack.c.b16 %v1158, %v1157
        %v1169 = vpack.c.b16 %v1160, %v1159
        %v1170 = vpack.c.b16 %v1162, %v1161
        %1179 = vmatpush.bf16.msra.mxu0 %v1170
        %1180 = vmatpush.bf16.msra.mxu0 %v1169
        %1181 = vmatpush.bf16.msra.mxu0 %v1168
        %1182 = vmatpush.bf16.msra.mxu0 %v1167
        %1183 = vmatpush.bf16.msra.mxu0 %v1166
        %1184 = vmatpush.bf16.msra.mxu0 %v1165
        %1185 = vmatpush.bf16.msra.mxu0 %v1164
        %1186 = vmatpush.bf16.msra.mxu0 %v1163
        %1187 = vmatmul.bf16.gmra.mxu0 %v492
        %v1188 = vpop.f32.mrf.mxu0
        %v1189 = vadd.f32 0.0, %v1188
        %v1190 = vpop.f32.mrf.mxu0
        %v1191 = vadd.f32 0.0, %v1190
        %1192 = vmatmul.bf16.gmra.mxu0 %v493
        %v1193 = vpop.f32.mrf.mxu0
        %v1194 = vadd.f32 0.0, %v1193
        %v1195 = vpop.f32.mrf.mxu0
        %v1196 = vadd.f32 0.0, %v1195
        %1197 = vmatmul.bf16.gmra.mxu0 %v494
        %v1198 = vpop.f32.mrf.mxu0
        %v1199 = vadd.f32 0.0, %v1198
        %v1200 = vpop.f32.mrf.mxu0
        %v1201 = vadd.f32 0.0, %v1200
        %1202 = vmatmul.bf16.gmra.mxu0 %v495
        %v1203 = vpop.f32.mrf.mxu0
        %v1204 = vadd.f32 0.0, %v1203
        %v1205 = vpop.f32.mrf.mxu0
        %v1206 = vadd.f32 0.0, %v1205
        %1207 = vmatmul.bf16.gmra.mxu0 %v496
        %v1208 = vpop.f32.mrf.mxu0
        %v1209 = vadd.f32 0.0, %v1208
        %v1210 = vpop.f32.mrf.mxu0
        %v1211 = vadd.f32 0.0, %v1210
        %1212 = vmatmul.bf16.gmra.mxu0 %v497
        %v1213 = vpop.f32.mrf.mxu0
        %v1214 = vadd.f32 0.0, %v1213
        %v1215 = vpop.f32.mrf.mxu0
        %v1216 = vadd.f32 0.0, %v1215
        %1217 = vmatmul.bf16.gmra.mxu0 %v498
        %v1218 = vpop.f32.mrf.mxu0
        %v1219 = vadd.f32 0.0, %v1218
        %v1220 = vpop.f32.mrf.mxu0
        %v1221 = vadd.f32 0.0, %v1220
        %1222 = vmatmul.bf16.gmra.mxu0 %v499
        %v1223 = vpop.f32.mrf.mxu0
        %v1224 = vadd.f32 0.0, %v1223
        %v1225 = vpop.f32.mrf.mxu0
        %v1226 = vadd.f32 0.0, %v1225
        %1227 = vdwg.mxu0
        %1229 = vset.pattern.permute.xlu0 0
        %1230 = vperm.xlu0 %1229, %v501
        %v1231 = vpop.permute.xlu0 %1230
        %1234 = vset.pattern.permute.xlu0 0
        %1235 = vperm.xlu0 %1234, %v502
        %v1236 = vpop.permute.xlu0 %1235
        %1239 = vset.pattern.permute.xlu0 0
        %1240 = vperm.xlu0 %1239, %v503
        %v1241 = vpop.permute.xlu0 %1240
        %1244 = vset.pattern.permute.xlu0 0
        %1245 = vperm.xlu0 %1244, %v504
        %v1246 = vpop.permute.xlu0 %1245
        %1249 = vset.pattern.permute.xlu0 0
        %1250 = vperm.xlu0 %1249, %v505
        %v1251 = vpop.permute.xlu0 %1250
        %1254 = vset.pattern.permute.xlu0 0
        %1255 = vperm.xlu0 %1254, %v506
        %v1256 = vpop.permute.xlu0 %1255
        %1259 = vset.pattern.permute.xlu0 0
        %1260 = vperm.xlu0 %1259, %v507
        %v1261 = vpop.permute.xlu0 %1260
        %1264 = vset.pattern.permute.xlu0 0
        %1265 = vperm.xlu0 %1264, %v508
        %v1266 = vpop.permute.xlu0 %1265
        %1269 = vset.pattern.permute.xlu0 0
        %1270 = vperm.xlu0 %1269, %v509
        %v1271 = vpop.permute.xlu0 %1270
        %1274 = vset.pattern.permute.xlu0 0
        %1275 = vperm.xlu0 %1274, %v510
        %v1276 = vpop.permute.xlu0 %1275
        %1279 = vset.pattern.permute.xlu0 0
        %1280 = vperm.xlu0 %1279, %v511
        %v1281 = vpop.permute.xlu0 %1280
        %1284 = vset.pattern.permute.xlu0 0
        %1285 = vperm.xlu0 %1284, %v512
        %v1286 = vpop.permute.xlu0 %1285
        %1289 = vset.pattern.permute.xlu0 0
        %1290 = vperm.xlu0 %1289, %v513
        %v1291 = vpop.permute.xlu0 %1290
        %1294 = vset.pattern.permute.xlu0 0
        %1295 = vperm.xlu0 %1294, %v514
        %v1296 = vpop.permute.xlu0 %1295
        %1299 = vset.pattern.permute.xlu0 0
        %1300 = vperm.xlu0 %1299, %v515
        %v1301 = vpop.permute.xlu0 %1300
        %1304 = vset.pattern.permute.xlu0 0
        %1305 = vperm.xlu0 %1304, %v516
        %v1306 = vpop.permute.xlu0 %1305
        %v1308 = vmul.f32 %v1189, %v1231
        %v1309 = vmul.f32 %v1191, %v1236
        %v1310 = vmul.f32 %v1194, %v1241
        %v1311 = vmul.f32 %v1196, %v1246
        %v1312 = vmul.f32 %v1199, %v1251
        %v1313 = vmul.f32 %v1201, %v1256
        %v1314 = vmul.f32 %v1204, %v1261
        %v1315 = vmul.f32 %v1206, %v1266
        %v1316 = vmul.f32 %v1209, %v1271
        %v1317 = vmul.f32 %v1211, %v1276
        %v1318 = vmul.f32 %v1214, %v1281
        %v1319 = vmul.f32 %v1216, %v1286
        %v1320 = vmul.f32 %v1219, %v1291
        %v1321 = vmul.f32 %v1221, %v1296
        %v1322 = vmul.f32 %v1224, %v1301
        %v1323 = vmul.f32 %v1226, %v1306
        %v1324 = vpack.c.bf16 %v1309, %v1308
        %v1325 = vpack.c.bf16 %v1311, %v1310
        %v1326 = vpack.c.bf16 %v1313, %v1312
        %v1327 = vpack.c.bf16 %v1315, %v1314
        %v1328 = vpack.c.bf16 %v1317, %v1316
        %v1329 = vpack.c.bf16 %v1319, %v1318
        %v1330 = vpack.c.bf16 %v1321, %v1320
        %v1331 = vpack.c.bf16 %v1323, %v1322
        %s1332 = smul.u32 %s1111, 16
        %s1333 = smul.addr %s1332, 4
        %s1334 = scalar_lea.vmem %s5, %s1333
        %v1335 = vld [vmem:[%s1334] sm:$0xf]
        %v1336 = vld [vmem:[%s1334 + $0x4] sm:$0xf]
        %v1337 = vld [vmem:[%s1334 + $0x8] sm:$0xf]
        %v1338 = vld [vmem:[%s1334 + $0xc] sm:$0xf]
        %v1339 = vld [vmem:[%s1334 + $0x10] sm:$0xf]
        %v1340 = vld [vmem:[%s1334 + $0x14] sm:$0xf]
        %v1341 = vld [vmem:[%s1334 + $0x18] sm:$0xf]
        %v1342 = vld [vmem:[%s1334 + $0x1c] sm:$0xf]
        %v1343 = vld [vmem:[%s1334 + $0x20] sm:$0xf]
        %v1344 = vld [vmem:[%s1334 + $0x24] sm:$0xf]
        %v1345 = vld [vmem:[%s1334 + $0x28] sm:$0xf]
        %v1346 = vld [vmem:[%s1334 + $0x2c] sm:$0xf]
        %v1347 = vld [vmem:[%s1334 + $0x30] sm:$0xf]
        %v1348 = vld [vmem:[%s1334 + $0x34] sm:$0xf]
        %v1349 = vld [vmem:[%s1334 + $0x38] sm:$0xf]
        %v1350 = vld [vmem:[%s1334 + $0x3c] sm:$0xf]
        %s1351 = sshra.s32 %s430, 3
        %s1352 = sand.u32 %s430, 7
        %s1353 = sadd.s32 %s1351, %s1112
        %s1354 = smul.addr %s1353, 4
        %s1355 = scalar_lea.vmem [#allocation2], %s1354
        %v1356 = vld [vmem:[%s1355] sm:$0xf]
        %v1357 = vld [vmem:[%s1355 + $0x4] sm:$0xf]
        %v1358 = vld [vmem:[%s1355 + $0x8] sm:$0xf]
        %v1359 = vld [vmem:[%s1355 + $0xc] sm:$0xf]
        %v1360 = vld [vmem:[%s1355 + $0x10] sm:$0xf]
        %v1361 = vld [vmem:[%s1355 + $0x14] sm:$0xf]
        %v1362 = vld [vmem:[%s1355 + $0x18] sm:$0xf]
        %v1363 = vld [vmem:[%s1355 + $0x1c] sm:$0xf]
        %v1364 = vld [vmem:[%s1355 + $0x20] sm:$0xf]
        %v1365 = vld [vmem:[%s1355 + $0x24] sm:$0xf]
        %v1366 = vld [vmem:[%s1355 + $0x28] sm:$0xf]
        %v1367 = vld [vmem:[%s1355 + $0x2c] sm:$0xf]
        %v1368 = vld [vmem:[%s1355 + $0x30] sm:$0xf]
        %v1369 = vld [vmem:[%s1355 + $0x34] sm:$0xf]
        %v1370 = vld [vmem:[%s1355 + $0x38] sm:$0xf]
        %v1371 = vld [vmem:[%s1355 + $0x3c] sm:$0xf]
        %s1372 = smul.addr %s1332, 4
        %s1373 = scalar_lea.vmem %s6, %s1372
        %v1374 = vld [vmem:[%s1373] sm:$0xf]
        %v1375 = vld [vmem:[%s1373 + $0x4] sm:$0xf]
        %v1376 = vld [vmem:[%s1373 + $0x8] sm:$0xf]
        %v1377 = vld [vmem:[%s1373 + $0xc] sm:$0xf]
        %v1378 = vld [vmem:[%s1373 + $0x10] sm:$0xf]
        %v1379 = vld [vmem:[%s1373 + $0x14] sm:$0xf]
        %v1380 = vld [vmem:[%s1373 + $0x18] sm:$0xf]
        %v1381 = vld [vmem:[%s1373 + $0x1c] sm:$0xf]
        %v1382 = vld [vmem:[%s1373 + $0x20] sm:$0xf]
        %v1383 = vld [vmem:[%s1373 + $0x24] sm:$0xf]
        %v1384 = vld [vmem:[%s1373 + $0x28] sm:$0xf]
        %v1385 = vld [vmem:[%s1373 + $0x2c] sm:$0xf]
        %v1386 = vld [vmem:[%s1373 + $0x30] sm:$0xf]
        %v1387 = vld [vmem:[%s1373 + $0x34] sm:$0xf]
        %v1388 = vld [vmem:[%s1373 + $0x38] sm:$0xf]
        %v1389 = vld [vmem:[%s1373 + $0x3c] sm:$0xf]
        %v1406 = vunpack.c.l.b16 %v1356
        %v1407 = vunpack.c.l.b16 %v1357
        %v1408 = vunpack.c.l.b16 %v1358
        %v1409 = vunpack.c.l.b16 %v1359
        %v1410 = vunpack.c.l.b16 %v1360
        %v1411 = vunpack.c.l.b16 %v1361
        %v1412 = vunpack.c.l.b16 %v1362
        %v1413 = vunpack.c.l.b16 %v1363
        %v1414 = vunpack.c.l.b16 %v1364
        %v1415 = vunpack.c.l.b16 %v1365
        %v1416 = vunpack.c.l.b16 %v1366
        %v1417 = vunpack.c.l.b16 %v1367
        %v1418 = vunpack.c.l.b16 %v1368
        %v1419 = vunpack.c.l.b16 %v1369
        %v1420 = vunpack.c.l.b16 %v1370
        %v1421 = vunpack.c.l.b16 %v1371
        %v1422 = vpack.c.b16 %v1407, %v1406
        %v1423 = vpack.c.b16 %v1409, %v1408
        %v1424 = vpack.c.b16 %v1411, %v1410
        %v1425 = vpack.c.b16 %v1413, %v1412
        %v1426 = vpack.c.b16 %v1415, %v1414
        %v1427 = vpack.c.b16 %v1417, %v1416
        %v1428 = vpack.c.b16 %v1419, %v1418
        %v1429 = vpack.c.b16 %v1421, %v1420
        %v1454 = vunpack.c.l.b16 %v1374
        %v1455 = vunpack.c.l.b16 %v1375
        %v1456 = vunpack.c.l.b16 %v1376
        %v1457 = vunpack.c.l.b16 %v1377
        %v1458 = vunpack.c.l.b16 %v1378
        %v1459 = vunpack.c.l.b16 %v1379
        %v1460 = vunpack.c.l.b16 %v1380
        %v1461 = vunpack.c.l.b16 %v1381
        %v1462 = vunpack.c.l.b16 %v1382
        %v1463 = vunpack.c.l.b16 %v1383
        %v1464 = vunpack.c.l.b16 %v1384
        %v1465 = vunpack.c.l.b16 %v1385
        %v1466 = vunpack.c.l.b16 %v1386
        %v1467 = vunpack.c.l.b16 %v1387
        %v1468 = vunpack.c.l.b16 %v1388
        %v1469 = vunpack.c.l.b16 %v1389
        %v1470 = vpack.c.b16 %v1455, %v1454
        %v1471 = vpack.c.b16 %v1457, %v1456
        %v1472 = vpack.c.b16 %v1459, %v1458
        %v1473 = vpack.c.b16 %v1461, %v1460
        %v1474 = vpack.c.b16 %v1463, %v1462
        %v1475 = vpack.c.b16 %v1465, %v1464
        %v1476 = vpack.c.b16 %v1467, %v1466
        %v1477 = vpack.c.b16 %v1469, %v1468
        %1486 = vmatpush.bf16.msra.mxu0 %v1477
        %1487 = vmatpush.bf16.msra.mxu0 %v1476
        %1488 = vmatpush.bf16.msra.mxu0 %v1475
        %1489 = vmatpush.bf16.msra.mxu0 %v1474
        %1490 = vmatpush.bf16.msra.mxu0 %v1473
        %1491 = vmatpush.bf16.msra.mxu0 %v1472
        %1492 = vmatpush.bf16.msra.mxu0 %v1471
        %1493 = vmatpush.bf16.msra.mxu0 %v1470
        %1494 = vmatmul.bf16.gmra.mxu0 %v1422
        %v1495 = vpop.f32.mrf.mxu0
        %v1496 = vadd.f32 0.0, %v1495
        %v1497 = vpop.f32.mrf.mxu0
        %v1498 = vadd.f32 0.0, %v1497
        %1499 = vmatmul.bf16.gmra.mxu0 %v1423
        %v1500 = vpop.f32.mrf.mxu0
        %v1501 = vadd.f32 0.0, %v1500
        %v1502 = vpop.f32.mrf.mxu0
        %v1503 = vadd.f32 0.0, %v1502
        %1504 = vmatmul.bf16.gmra.mxu0 %v1424
        %v1505 = vpop.f32.mrf.mxu0
        %v1506 = vadd.f32 0.0, %v1505
        %v1507 = vpop.f32.mrf.mxu0
        %v1508 = vadd.f32 0.0, %v1507
        %1509 = vmatmul.bf16.gmra.mxu0 %v1425
        %v1510 = vpop.f32.mrf.mxu0
        %v1511 = vadd.f32 0.0, %v1510
        %v1512 = vpop.f32.mrf.mxu0
        %v1513 = vadd.f32 0.0, %v1512
        %1514 = vmatmul.bf16.gmra.mxu0 %v1426
        %v1515 = vpop.f32.mrf.mxu0
        %v1516 = vadd.f32 0.0, %v1515
        %v1517 = vpop.f32.mrf.mxu0
        %v1518 = vadd.f32 0.0, %v1517
        %1519 = vmatmul.bf16.gmra.mxu0 %v1427
        %v1520 = vpop.f32.mrf.mxu0
        %v1521 = vadd.f32 0.0, %v1520
        %v1522 = vpop.f32.mrf.mxu0
        %v1523 = vadd.f32 0.0, %v1522
        %1524 = vmatmul.bf16.gmra.mxu0 %v1428
        %v1525 = vpop.f32.mrf.mxu0
        %v1526 = vadd.f32 0.0, %v1525
        %v1527 = vpop.f32.mrf.mxu0
        %v1528 = vadd.f32 0.0, %v1527
        %1529 = vmatmul.bf16.gmra.mxu0 %v1429
        %v1530 = vpop.f32.mrf.mxu0
        %v1531 = vadd.f32 0.0, %v1530
        %v1532 = vpop.f32.mrf.mxu0
        %v1533 = vadd.f32 0.0, %v1532
        %1534 = vdwg.mxu0
        %v1551 = vunpack.c.l.b16 %v1335
        %v1552 = vunpack.c.l.b16 %v1336
        %v1553 = vunpack.c.l.b16 %v1337
        %v1554 = vunpack.c.l.b16 %v1338
        %v1555 = vunpack.c.l.b16 %v1339
        %v1556 = vunpack.c.l.b16 %v1340
        %v1557 = vunpack.c.l.b16 %v1341
        %v1558 = vunpack.c.l.b16 %v1342
        %v1559 = vunpack.c.l.b16 %v1343
        %v1560 = vunpack.c.l.b16 %v1344
        %v1561 = vunpack.c.l.b16 %v1345
        %v1562 = vunpack.c.l.b16 %v1346
        %v1563 = vunpack.c.l.b16 %v1347
        %v1564 = vunpack.c.l.b16 %v1348
        %v1565 = vunpack.c.l.b16 %v1349
        %v1566 = vunpack.c.l.b16 %v1350
        %v1567 = vpack.c.b16 %v1552, %v1551
        %v1568 = vpack.c.b16 %v1554, %v1553
        %v1569 = vpack.c.b16 %v1556, %v1555
        %v1570 = vpack.c.b16 %v1558, %v1557
        %v1571 = vpack.c.b16 %v1560, %v1559
        %v1572 = vpack.c.b16 %v1562, %v1561
        %v1573 = vpack.c.b16 %v1564, %v1563
        %v1574 = vpack.c.b16 %v1566, %v1565
        %1583 = vmatpush.bf16.msra.mxu0 %v1574
        %1584 = vmatpush.bf16.msra.mxu0 %v1573
        %1585 = vmatpush.bf16.msra.mxu0 %v1572
        %1586 = vmatpush.bf16.msra.mxu0 %v1571
        %1587 = vmatpush.bf16.msra.mxu0 %v1570
        %1588 = vmatpush.bf16.msra.mxu0 %v1569
        %1589 = vmatpush.bf16.msra.mxu0 %v1568
        %1590 = vmatpush.bf16.msra.mxu0 %v1567
        %1591 = vmatmul.bf16.gmra.mxu0 %v1324
        %v1592 = vpop.f32.mrf.mxu0
        %v1593 = vadd.f32 %v1496, %v1592
        %v1594 = vpop.f32.mrf.mxu0
        %v1595 = vadd.f32 %v1498, %v1594
        %1596 = vmatmul.bf16.gmra.mxu0 %v1325
        %v1597 = vpop.f32.mrf.mxu0
        %v1598 = vadd.f32 %v1501, %v1597
        %v1599 = vpop.f32.mrf.mxu0
        %v1600 = vadd.f32 %v1503, %v1599
        %1601 = vmatmul.bf16.gmra.mxu0 %v1326
        %v1602 = vpop.f32.mrf.mxu0
        %v1603 = vadd.f32 %v1506, %v1602
        %v1604 = vpop.f32.mrf.mxu0
        %v1605 = vadd.f32 %v1508, %v1604
        %1606 = vmatmul.bf16.gmra.mxu0 %v1327
        %v1607 = vpop.f32.mrf.mxu0
        %v1608 = vadd.f32 %v1511, %v1607
        %v1609 = vpop.f32.mrf.mxu0
        %v1610 = vadd.f32 %v1513, %v1609
        %1611 = vmatmul.bf16.gmra.mxu0 %v1328
        %v1612 = vpop.f32.mrf.mxu0
        %v1613 = vadd.f32 %v1516, %v1612
        %v1614 = vpop.f32.mrf.mxu0
        %v1615 = vadd.f32 %v1518, %v1614
        %1616 = vmatmul.bf16.gmra.mxu0 %v1329
        %v1617 = vpop.f32.mrf.mxu0
        %v1618 = vadd.f32 %v1521, %v1617
        %v1619 = vpop.f32.mrf.mxu0
        %v1620 = vadd.f32 %v1523, %v1619
        %1621 = vmatmul.bf16.gmra.mxu0 %v1330
        %v1622 = vpop.f32.mrf.mxu0
        %v1623 = vadd.f32 %v1526, %v1622
        %v1624 = vpop.f32.mrf.mxu0
        %v1625 = vadd.f32 %v1528, %v1624
        %1626 = vmatmul.bf16.gmra.mxu0 %v1331
        %v1627 = vpop.f32.mrf.mxu0
        %v1628 = vadd.f32 %v1531, %v1627
        %v1629 = vpop.f32.mrf.mxu0
        %v1630 = vadd.f32 %v1533, %v1629
        %1631 = vdwg.mxu0
        %v1633 = vperm.slane %v518, 0
        %v1635 = vadd.f32 %v1593, %v1633
        %v1636 = vadd.f32 %v1595, %v1633
        %v1637 = vadd.f32 %v1598, %v1633
        %v1638 = vadd.f32 %v1600, %v1633
        %v1639 = vadd.f32 %v1603, %v1633
        %v1640 = vadd.f32 %v1605, %v1633
        %v1641 = vadd.f32 %v1608, %v1633
        %v1642 = vadd.f32 %v1610, %v1633
        %v1643 = vadd.f32 %v1613, %v1633
        %v1644 = vadd.f32 %v1615, %v1633
        %v1645 = vadd.f32 %v1618, %v1633
        %v1646 = vadd.f32 %v1620, %v1633
        %v1647 = vadd.f32 %v1623, %v1633
        %v1648 = vadd.f32 %v1625, %v1633
        %v1649 = vadd.f32 %v1628, %v1633
        %v1650 = vadd.f32 %v1630, %v1633
        %v1651 = vmax.f32 %v1635, 0.0
        %v1652 = vmax.f32 %v1636, 0.0
        %v1653 = vmax.f32 %v1637, 0.0
        %v1654 = vmax.f32 %v1638, 0.0
        %v1655 = vmax.f32 %v1639, 0.0
        %v1656 = vmax.f32 %v1640, 0.0
        %v1657 = vmax.f32 %v1641, 0.0
        %v1658 = vmax.f32 %v1642, 0.0
        %v1659 = vmax.f32 %v1643, 0.0
        %v1660 = vmax.f32 %v1644, 0.0
        %v1661 = vmax.f32 %v1645, 0.0
        %v1662 = vmax.f32 %v1646, 0.0
        %v1663 = vmax.f32 %v1647, 0.0
        %v1664 = vmax.f32 %v1648, 0.0
        %v1665 = vmax.f32 %v1649, 0.0
        %v1666 = vmax.f32 %v1650, 0.0
        %v1667 = vpack.c.bf16 %v1651, %v1651
        %v1668 = vpack.c.bf16 %v1652, %v1652
        %v1669 = vpack.c.bf16 %v1653, %v1653
        %v1670 = vpack.c.bf16 %v1654, %v1654
        %v1671 = vpack.c.bf16 %v1655, %v1655
        %v1672 = vpack.c.bf16 %v1656, %v1656
        %v1673 = vpack.c.bf16 %v1657, %v1657
        %v1674 = vpack.c.bf16 %v1658, %v1658
        %v1675 = vpack.c.bf16 %v1659, %v1659
        %v1676 = vpack.c.bf16 %v1660, %v1660
        %v1677 = vpack.c.bf16 %v1661, %v1661
        %v1678 = vpack.c.bf16 %v1662, %v1662
        %v1679 = vpack.c.bf16 %v1663, %v1663
        %v1680 = vpack.c.bf16 %v1664, %v1664
        %v1681 = vpack.c.bf16 %v1665, %v1665
        %v1682 = vpack.c.bf16 %v1666, %v1666
        %s1683 = smul.u32 %s443, 16
        %s1684 = sadd.s32 %s1351, %s1683
        %s1685 = smul.addr %s1684, 4
        %s1686 = scalar_lea.vmem [#allocation2], %s1685
        %1687 = vst [vmem:[%s1686] sm:$0xf] %v1667
        %1688 = vst [vmem:[%s1686 + $0x4] sm:$0xf] %v1668
        %1689 = vst [vmem:[%s1686 + $0x8] sm:$0xf] %v1669
        %1690 = vst [vmem:[%s1686 + $0xc] sm:$0xf] %v1670
        %1691 = vst [vmem:[%s1686 + $0x10] sm:$0xf] %v1671
        %1692 = vst [vmem:[%s1686 + $0x14] sm:$0xf] %v1672
        %1693 = vst [vmem:[%s1686 + $0x18] sm:$0xf] %v1673
        %1694 = vst [vmem:[%s1686 + $0x1c] sm:$0xf] %v1674
        %1695 = vst [vmem:[%s1686 + $0x20] sm:$0xf] %v1675
        %1696 = vst [vmem:[%s1686 + $0x24] sm:$0xf] %v1676
        %1697 = vst [vmem:[%s1686 + $0x28] sm:$0xf] %v1677
        %1698 = vst [vmem:[%s1686 + $0x2c] sm:$0xf] %v1678
        %1699 = vst [vmem:[%s1686 + $0x30] sm:$0xf] %v1679
        %1700 = vst [vmem:[%s1686 + $0x34] sm:$0xf] %v1680
        %1701 = vst [vmem:[%s1686 + $0x38] sm:$0xf] %v1681
        %1702 = vst [vmem:[%s1686 + $0x3c] sm:$0xf] %v1682
      $region76: #{sage_model_forward.1} parent=67 // pred_fallthru
        _
      %p1703 = scmp.eq.s32.totalorder %s27, 2
      // Predicated region
      $region77: #{sage_model_forward.1} parent=67 // pred_check
        %p1704 = pneg %p1703
      $region78: #{sage_model_forward.1} parent=67 // pred_check_branch
        %1706 = sbr.rel (%p1704) target = $region80
      $region79: #{sage_model_forward.1} parent=67 // pred_region
        %p1707 = scmp.eq.s32.totalorder %s28, 0
        // Predicated region
        $region81: #{sage_model_forward.1} parent=79 // pred_check
          %p1708 = pneg %p1707
        $region82: #{sage_model_forward.1} parent=79 // pred_check_branch
          %1710 = sbr.rel (%p1708) target = $region84
        $region83: #{sage_model_forward.1} parent=79 // pred_region
          %1711 = vst [vmem:[#allocation3] sm:$0xff] 0.0
        $region84: #{sage_model_forward.1} parent=79 // pred_fallthru
          _
        %s1712 = sshra.s32 %s430, 3
        %s1713 = sand.u32 %s430, 7
        %s1714 = smul.u32 %s443, 16
        %s1715 = sadd.s32 %s1712, %s1714
        %s1716 = smul.addr %s1715, 4
        %s1717 = scalar_lea.vmem [#allocation2], %s1716
        %v1718 = vld [vmem:[%s1717] sm:$0xf]
        %v1719 = vld [vmem:[%s1717 + $0x4] sm:$0xf]
        %v1720 = vld [vmem:[%s1717 + $0x8] sm:$0xf]
        %v1721 = vld [vmem:[%s1717 + $0xc] sm:$0xf]
        %v1722 = vld [vmem:[%s1717 + $0x10] sm:$0xf]
        %v1723 = vld [vmem:[%s1717 + $0x14] sm:$0xf]
        %v1724 = vld [vmem:[%s1717 + $0x18] sm:$0xf]
        %v1725 = vld [vmem:[%s1717 + $0x1c] sm:$0xf]
        %v1726 = vld [vmem:[%s1717 + $0x20] sm:$0xf]
        %v1727 = vld [vmem:[%s1717 + $0x24] sm:$0xf]
        %v1728 = vld [vmem:[%s1717 + $0x28] sm:$0xf]
        %v1729 = vld [vmem:[%s1717 + $0x2c] sm:$0xf]
        %v1730 = vld [vmem:[%s1717 + $0x30] sm:$0xf]
        %v1731 = vld [vmem:[%s1717 + $0x34] sm:$0xf]
        %v1732 = vld [vmem:[%s1717 + $0x38] sm:$0xf]
        %v1733 = vld [vmem:[%s1717 + $0x3c] sm:$0xf]
        %v1734 = vld [vmem:[#allocation3] sm:$0xff]
        %v1735 = vld [vmem:[%s429] sm:$0xf]
        %v1752 = vunpack.c.l.b16 %v1718
        %v1753 = vunpack.c.l.b16 %v1719
        %v1754 = vunpack.c.l.b16 %v1720
        %v1755 = vunpack.c.l.b16 %v1721
        %v1756 = vunpack.c.l.b16 %v1722
        %v1757 = vunpack.c.l.b16 %v1723
        %v1758 = vunpack.c.l.b16 %v1724
        %v1759 = vunpack.c.l.b16 %v1725
        %v1760 = vunpack.c.l.b16 %v1726
        %v1761 = vunpack.c.l.b16 %v1727
        %v1762 = vunpack.c.l.b16 %v1728
        %v1763 = vunpack.c.l.b16 %v1729
        %v1764 = vunpack.c.l.b16 %v1730
        %v1765 = vunpack.c.l.b16 %v1731
        %v1766 = vunpack.c.l.b16 %v1732
        %v1767 = vunpack.c.l.b16 %v1733
        %v1768 = vpack.c.b16 %v1753, %v1752
        %v1769 = vpack.c.b16 %v1755, %v1754
        %v1770 = vpack.c.b16 %v1757, %v1756
        %v1771 = vpack.c.b16 %v1759, %v1758
        %v1772 = vpack.c.b16 %v1761, %v1760
        %v1773 = vpack.c.b16 %v1763, %v1762
        %v1774 = vpack.c.b16 %v1765, %v1764
        %v1775 = vpack.c.b16 %v1767, %v1766
        %1784 = vmatpush.bf16.msra.mxu0 %v1775
        %1785 = vmatpush.bf16.msra.mxu0 %v1774
        %1786 = vmatpush.bf16.msra.mxu0 %v1773
        %1787 = vmatpush.bf16.msra.mxu0 %v1772
        %1788 = vmatpush.bf16.msra.mxu0 %v1771
        %1789 = vmatpush.bf16.msra.mxu0 %v1770
        %1790 = vmatpush.bf16.msra.mxu0 %v1769
        %1791 = vmatpush.bf16.msra.mxu0 %v1768
        %1792 = vmatmul.bf16.gmra.mxu0 %v1735
        %v1793 = vpop.f32.mrf.mxu0
        %v1794 = vadd.f32 0.0, %v1793
        %v1795 = vpop.f32.mrf.mxu0
        %1796 = vdwg.mxu0
        %v1797 = vadd.f32 %v1734, %v1794
        %1798 = vst [vmem:[#allocation3] sm:$0xff] %v1797
        // Predicated region
        $region85: #{sage_model_forward.1} parent=79 // pred_check
          %p1799 = pneg %p1707
        $region86: #{sage_model_forward.1} parent=79 // pred_check_branch
          %1801 = sbr.rel (%p1799) target = $region88
        $region87: #{sage_model_forward.1} parent=79 // pred_region
          %v1802 = vld [vmem:[#allocation3] sm:$0xff]
          %v1803 = vld [vmem:[%s9] sm:$0xff]
          %1805 = vset.pattern.permute.xlu0 0
          %1806 = vperm.xlu0 %1805, %v1803
          %v1807 = vpop.permute.xlu0 %1806
          %v1809 = vmul.f32 %v1802, %v1807
          %v1810 = vpack.c.bf16 %v1809, %v1809
          %v1811 = vld [vmem:[%s10] sm:$0xf]
          %v1812 = vld [vmem:[%s10 + $0x4] sm:$0xf]
          %v1813 = vld [vmem:[%s10 + $0x8] sm:$0xf]
          %v1814 = vld [vmem:[%s10 + $0xc] sm:$0xf]
          %v1815 = vld [vmem:[%s10 + $0x10] sm:$0xf]
          %v1816 = vld [vmem:[%s10 + $0x14] sm:$0xf]
          %v1817 = vld [vmem:[%s10 + $0x18] sm:$0xf]
          %v1818 = vld [vmem:[%s10 + $0x1c] sm:$0xf]
          %v1819 = vld [vmem:[%s10 + $0x20] sm:$0xf]
          %v1820 = vld [vmem:[%s10 + $0x24] sm:$0xf]
          %v1821 = vld [vmem:[%s10 + $0x28] sm:$0xf]
          %v1822 = vld [vmem:[%s10 + $0x2c] sm:$0xf]
          %v1823 = vld [vmem:[%s10 + $0x30] sm:$0xf]
          %v1824 = vld [vmem:[%s10 + $0x34] sm:$0xf]
          %v1825 = vld [vmem:[%s10 + $0x38] sm:$0xf]
          %v1826 = vld [vmem:[%s10 + $0x3c] sm:$0xf]
          %v1827 = vld [vmem:[%s11] sm:$0x1]
          %v1829 = vperm.slane %v1827, 0
          %v1847 = vunpack.c.l.b16 %v1811
          %v1848 = vunpack.c.l.b16 %v1812
          %v1849 = vunpack.c.l.b16 %v1813
          %v1850 = vunpack.c.l.b16 %v1814
          %v1851 = vunpack.c.l.b16 %v1815
          %v1852 = vunpack.c.l.b16 %v1816
          %v1853 = vunpack.c.l.b16 %v1817
          %v1854 = vunpack.c.l.b16 %v1818
          %v1855 = vunpack.c.l.b16 %v1819
          %v1856 = vunpack.c.l.b16 %v1820
          %v1857 = vunpack.c.l.b16 %v1821
          %v1858 = vunpack.c.l.b16 %v1822
          %v1859 = vunpack.c.l.b16 %v1823
          %v1860 = vunpack.c.l.b16 %v1824
          %v1861 = vunpack.c.l.b16 %v1825
          %v1862 = vunpack.c.l.b16 %v1826
          %v1863 = vpack.c.b16 %v1848, %v1847
          %v1864 = vpack.c.b16 %v1850, %v1849
          %v1865 = vpack.c.b16 %v1852, %v1851
          %v1866 = vpack.c.b16 %v1854, %v1853
          %v1867 = vpack.c.b16 %v1856, %v1855
          %v1868 = vpack.c.b16 %v1858, %v1857
          %v1869 = vpack.c.b16 %v1860, %v1859
          %v1870 = vpack.c.b16 %v1862, %v1861
          %1879 = vmatpush.bf16.msra.mxu0 %v1870
          %1880 = vmatpush.bf16.msra.mxu0 %v1869
          %1881 = vmatpush.bf16.msra.mxu0 %v1868
          %1882 = vmatpush.bf16.msra.mxu0 %v1867
          %1883 = vmatpush.bf16.msra.mxu0 %v1866
          %1884 = vmatpush.bf16.msra.mxu0 %v1865
          %1885 = vmatpush.bf16.msra.mxu0 %v1864
          %1886 = vmatpush.bf16.msra.mxu0 %v1863
          %1887 = vmatmul.bf16.gmra.mxu0 %v1810
          %v1888 = vpop.f32.mrf.mxu0
          %v1889 = vadd.f32 %v1829, %v1888
          %v1890 = vpop.f32.mrf.mxu0
          %1891 = vdwg.mxu0
          %1892 = vst [vmem:[%s12] sm:$0xff] %v1889
        $region88: #{sage_model_forward.1} parent=79 // pred_fallthru
          _
      $region80: #{sage_model_forward.1} parent=67 // pred_fallthru
        _
      // Predicated region
      $region89: #{sage_model_forward.1} parent=67 // pred_check
        %p1893 = pneg %p310
      $region90: #{sage_model_forward.1} parent=67 // pred_check_branch
        %1895 = sbr.rel (%p1893) target = $region92
      $region91: #{sage_model_forward.1} parent=67 // pred_region
        _
      $region92: #{sage_model_forward.1} parent=67 // pred_fallthru
        _
      // Predicated region
      $region93: #{sage_model_forward.1} parent=67 // pred_check
        %p1896 = pneg %p310
      $region94: #{sage_model_forward.1} parent=67 // pred_check_branch
        %1898 = sbr.rel (%p1896) target = $region96
      $region95: #{sage_model_forward.1} parent=67 // pred_region
        _
      $region96: #{sage_model_forward.1} parent=67 // pred_fallthru
        _
    $region68: #{sage_model_forward.1} parent=5 // pred_fallthru
      _
    %p1899 = scmp.le.s32.totalorder 2, %s18
    // Predicated region
    $region97: #{sage_model_forward.1} parent=5 // pred_check
      %p1900 = pneg %p1899
    $region98: #{sage_model_forward.1} parent=5 // pred_check_branch
      %1902 = sbr.rel (%p1900) target = $region100
    $region99: #{sage_model_forward.1} parent=5 // pred_region
      %s1903 = ssub.s32 %s18, 2
    $region100: #{sage_model_forward.1} parent=5 // pred_fallthru
      _
  $region6: #{sage_model_forward.1} parent=0 // loop_footer
    %s22 = sadd.s32 1, %s18
  $region7: #{sage_model_forward.1} parent=0 // loop_footer_branch
    %17 = sbr.rel target = $region3
  $region8: #{sage_model_forward.1} parent=0 // loop_exit
    _

</llo_original>
